<compile_context>
chip_gen: v6e
topology: v6e:2x2x1
jax: 0.10.0
libtpu: 0.0.40
codegen_flags: <defaults>
</compile_context>

<pallas_src>
import jax
import jax.numpy as jnp
from jax import lax
from jax.experimental import pallas as pl
from jax.experimental.pallas import tpu as pltpu


NEG_INF = -1e30


# ----------------------------- in-kernel helpers --------------------------------

def _softmax(x):
    # softmax over last axis; divide goes to the EUP via approx reciprocal.
    m = jnp.max(x, axis=-1, keepdims=True)
    e = jnp.exp(x - m)
    return e * pl.reciprocal(jnp.sum(e, axis=-1, keepdims=True), approx=True)


def _layernorm(x, g, b, eps=1e-12):
    mu = jnp.mean(x, axis=-1, keepdims=True)
    var = jnp.mean((x - mu) ** 2, axis=-1, keepdims=True)
    return (x - mu) * lax.rsqrt(var + eps) * g + b


# ----------------------------- encoder kernel ------------------------------------

def encoder_kernel(x_ref, mask_ref, wq_ref, wk_ref, wv_ref, wo_ref,
                   g1_ref, b1_ref, w1_ref, c1_ref, w2_ref, c2_ref,
                   g2_ref, b2_ref, out_ref):
    x = x_ref[0]                                        # (S, D) f32
    S, D = x.shape
    mask_add = (1.0 - mask_ref[...][0]) * NEG_INF       # (1, S)
    scale = 1.0 / jnp.sqrt(jnp.float32(D))

    x_bf = x.astype(jnp.bfloat16)
    q = jnp.dot(x_bf, wq_ref[...], preferred_element_type=jnp.float32)
    k = jnp.dot(x_bf, wk_ref[...], preferred_element_type=jnp.float32)
    v = jnp.dot(x_bf, wv_ref[...], preferred_element_type=jnp.float32)

    scores = lax.dot_general(q.astype(jnp.bfloat16), k.astype(jnp.bfloat16),
                             (((1,), (1,)), ((), ())),
                             preferred_element_type=jnp.float32)   # (S, S)
    scores = scores * scale + mask_add
    probs = _softmax(scores)
    attn = jnp.dot(probs.astype(jnp.bfloat16), v.astype(jnp.bfloat16),
                   preferred_element_type=jnp.float32)
    attn = jnp.dot(attn.astype(jnp.bfloat16), wo_ref[...],
                   preferred_element_type=jnp.float32)

    h = _layernorm(x + attn, g1_ref[...], b1_ref[...])

    f = jax.nn.gelu(jnp.dot(h.astype(jnp.bfloat16), w1_ref[...],
                            preferred_element_type=jnp.float32) + c1_ref[...])
    f = jnp.dot(f.astype(jnp.bfloat16), w2_ref[...],
                preferred_element_type=jnp.float32) + c2_ref[...]

    out_ref[0] = _layernorm(h + f, g2_ref[...], b2_ref[...])


def _full_spec(a):
    nd = a.ndim
    return pl.BlockSpec(a.shape, lambda *args, nd=nd: (0,) * nd)


def run_encoder(emb_x, input_mask, p):
    B, S, D = emb_x.shape
    bf = jnp.bfloat16
    mask3 = input_mask.reshape(B, 1, S)
    weights = [p['enc_wq'].astype(bf), p['enc_wk'].astype(bf),
               p['enc_wv'].astype(bf), p['enc_wo'].astype(bf),
               p['enc_g1'], p['enc_b1'],
               p['enc_w1'].astype(bf), p['enc_c1'],
               p['enc_w2'].astype(bf), p['enc_c2'],
               p['enc_g2'], p['enc_b2']]
    in_specs = ([pl.BlockSpec((1, S, D), lambda b: (b, 0, 0)),
                 pl.BlockSpec((1, 1, S), lambda b: (b, 0, 0))]
                + [_full_spec(w) for w in weights])
    return pl.pallas_call(
        encoder_kernel,
        out_shape=jax.ShapeDtypeStruct((B, S, D), jnp.float32),
        grid=(B,),
        in_specs=in_specs,
        out_specs=pl.BlockSpec((1, S, D), lambda b: (b, 0, 0)),
        compiler_params=pltpu.CompilerParams(
            dimension_semantics=("parallel",)),
    )(emb_x, mask3, *weights)


# ----------------------------- decoder kernel A: GRU recurrence ------------------

def decoder_gru_kernel(ctx_ref, mask_ref, emb_ref,
                       wa_ref, we_ref, wsru_ref, wsh_ref, ball_ref, inith_ref,
                       hs_ref, state_ref):
    ctx = ctx_ref[...]                                  # (B, S, D) f32
    B, S, D = ctx.shape
    T = emb_ref.shape[0]
    scale = 1.0 / jnp.sqrt(jnp.float32(D))

    # hoisted loads (no per-iteration re-reads / re-broadcasts)
    ctx_bf = ctx.astype(jnp.bfloat16)
    mask_add = (1.0 - mask_ref[...]) * NEG_INF          # (B, S)
    wa = wa_ref[...]                                    # (D, 3D)  [r|u|c] attn chunk
    we = we_ref[...]                                    # (D, 3D)  [r|u|c] emb chunk
    wsru = wsru_ref[...]                                # (D, 2D)  [r|u] state chunk
    wsh = wsh_ref[...]                                  # (D, D)   cand state chunk
    ball = ball_ref[...]                                # (1, 3D)  [br|bu|bh]

    state_ref[...] = jnp.broadcast_to(inith_ref[...], (B, D))

    @pl.loop(0, T)
    def _step(i):
        ns = state_ref[...]                             # (B, D) f32
        ns_bf = ns.astype(jnp.bfloat16)

        # attention over encoder context (MXU einsum form)
        score = jnp.einsum('bud,bsd->bus', ns_bf[:, None, :], ctx_bf,
                           preferred_element_type=jnp.float32)[:, 0, :]
        score = score * scale + mask_add
        prob = _softmax(score)                          # (B, S)
        attn = jnp.einsum('bus,bsd->bud', prob.astype(jnp.bfloat16)[:, None, :],
                          ctx_bf, preferred_element_type=jnp.float32)[:, 0, :]

        emb_i = emb_ref[i]                              # (B, D) f32

        # fused gate projections: 4 chunk-matmuls instead of 9 per-gate matmuls
        pre = (jnp.dot(attn.astype(jnp.bfloat16), wa,
                       preferred_element_type=jnp.float32)
               + jnp.dot(emb_i.astype(jnp.bfloat16), we,
                         preferred_element_type=jnp.float32)
               + ball)                                  # (B, 3D)
        sproj = jnp.dot(ns_bf, wsru, preferred_element_type=jnp.float32)  # (B, 2D)
        ru = jax.nn.sigmoid(pre[:, :2 * D] + sproj)     # (B, 2D)
        r = ru[:, :D]
        u = ru[:, D:]
        cand = jnp.tanh(pre[:, 2 * D:]
                        + jnp.dot((r * ns).astype(jnp.bfloat16), wsh,
                                  preferred_element_type=jnp.float32))
        ns_new = (1.0 - u) * ns + u * cand
        state_ref[...] = ns_new
        hs_ref[i] = ns_new


def run_decoder_gru(ctx, mask, dec_emb_tm, p):
    B, S, D = ctx.shape
    T = dec_emb_tm.shape[0]
    bf = jnp.bfloat16
    wr, wu, wh = p['dec_wr'], p['dec_wu'], p['dec_wh']          # (3D, D) each
    w_attn = jnp.concatenate([wr[0:D], wu[0:D], wh[0:D]], axis=1).astype(bf)
    w_emb = jnp.concatenate([wr[D:2 * D], wu[D:2 * D], wh[D:2 * D]], axis=1).astype(bf)
    w_sru = jnp.concatenate([wr[2 * D:], wu[2 * D:]], axis=1).astype(bf)
    w_sh = wh[2 * D:].astype(bf)
    b_all = jnp.concatenate([p['dec_br'], p['dec_bu'], p['dec_bh']], axis=1)

    ins = [ctx, mask, dec_emb_tm, w_attn, w_emb, w_sru, w_sh, b_all,
           p['dec_init_h']]
    vmem = lambda: pl.BlockSpec(memory_space=pltpu.MemorySpace.VMEM)
    return pl.pallas_call(
        decoder_gru_kernel,
        out_shape=jax.ShapeDtypeStruct((T, B, D), jnp.float32),
        in_specs=[vmem() for _ in ins],
        out_specs=vmem(),
        scratch_shapes=[pltpu.VMEM((B, D), jnp.float32)],
    )(*ins)


# ----------------------------- decoder kernel B: batched output + NLL ------------

def decoder_output_kernel(hs_ref, ctx_ref, mask_ref, ids_ref, tgt_ref,
                          wo_ref, bo_ref, wc_ref, bc_ref, wm_ref, bm_ref,
                          embwt_ref, loss_ref):
    hs = hs_ref[...]                                    # (B, T, D) f32
    B, T, D = hs.shape
    ctx = ctx_ref[...]                                  # (B, S, D) f32
    V = embwt_ref.shape[1]
    mask_add = (1.0 - mask_ref[...]) * NEG_INF          # (B, S)
    tgt = tgt_ref[...]                                  # (B, T) int32

    hs_bf = hs.reshape(B * T, D).astype(jnp.bfloat16)

    # generation branch: one batched (B*T, D)@(D, D)@(D, V); target prob via
    # target-logit + logsumexp (no dense one-hot over V materialized in HBM).
    out = (jnp.dot(hs_bf, wo_ref[...], preferred_element_type=jnp.float32)
           + bo_ref[...])                               # (B*T, D)
    logits = jnp.dot(out.astype(jnp.bfloat16), embwt_ref[...],
                     preferred_element_type=jnp.float32)          # (B*T, V)
    logits3 = logits.reshape(B, T, V)
    m = jnp.max(logits3, axis=-1, keepdims=True)
    sumexp = jnp.sum(jnp.exp(logits3 - m), axis=-1, keepdims=True)
    iota_v = lax.broadcasted_iota(jnp.int32, (B, T, V), 2)
    tgt_logit = jnp.sum(jnp.where(iota_v == tgt[:, :, None], logits3, 0.0),
                        axis=-1, keepdims=True)                   # (B, T, 1)
    p_gen = jnp.exp(tgt_logit - m) * pl.reciprocal(sumexp, approx=True)

    # copy branch: scatter_add contribution at the target id is just the
    # attention mass on source positions whose id equals the target id.
    copy_out = (jnp.dot(hs_bf, wc_ref[...], preferred_element_type=jnp.float32)
                + bc_ref[...])                          # (B*T, D)
    copy3 = copy_out.reshape(B, T, D).astype(jnp.bfloat16)
    in_logits = jnp.einsum('btd,bsd->bts', copy3, ctx.astype(jnp.bfloat16),
                           preferred_element_type=jnp.float32)
    in_logits = in_logits + mask_add[:, None, :]
    in_prob = _softmax(in_logits)                       # (B, T, S)
    match = (ids_ref[...][:, None, :] == tgt[:, :, None]).astype(jnp.float32)
    p_copy = jnp.sum(in_prob * match, axis=-1, keepdims=True)     # (B, T, 1)

    # mode mixing + masked NLL (matches torch: -log(p + 1e-6) * (tgt != 0))
    mode = jax.nn.sigmoid(
        jnp.sum(hs * wm_ref[...][None, :, :], axis=-1, keepdims=True)
        + bm_ref[...])                                  # (B, T, 1)
    p_tgt = p_gen * mode + p_copy * (1.0 - mode)
    nz = (tgt[:, :, None] != 0).astype(jnp.float32)
    loss_ref[...] = -jnp.log(p_tgt + 1e-6) * nz


def run_decoder_output(hs, ctx, mask, ids, tgt, p):
    B, T, D = hs.shape
    bf = jnp.bfloat16
    embwt = p['word_emb'].T.astype(bf)                  # (D, V)
    ins = [hs, ctx, mask, ids, tgt,
           p['dec_wo'].astype(bf), p['dec_bo'],
           p['dec_wc'].astype(bf), p['dec_bc'],
           p['dec_wm'].T, p['dec_bm'],                  # wm as (1, D) row, f32
           embwt]
    vmem = lambda: pl.BlockSpec(memory_space=pltpu.MemorySpace.VMEM)
    out = pl.pallas_call(
        decoder_output_kernel,
        out_shape=jax.ShapeDtypeStruct((B, T, 1), jnp.float32),
        in_specs=[vmem() for _ in ins],
        out_specs=vmem(),
    )(*ins)
    return out[:, :, 0]                                 # (B, T) masked NLL per token


# ----------------------------- model wrapper (glue) ------------------------------

def init_params(key, D, V, F, S):
    ks = iter(jax.random.split(key, 24))

    def n(shape, s=0.02):
        return (s * jax.random.normal(next(ks), shape)).astype(jnp.float32)

    p = {}
    p['word_emb'] = n((V, D))
    p['seg_emb'] = n((2, D))
    p['pos_emb'] = n((S, D))
    # encoder (single transformer layer stand-in for RoBERTa)
    p['enc_wq'], p['enc_wk'], p['enc_wv'], p['enc_wo'] = (
        n((D, D)), n((D, D)), n((D, D)), n((D, D)))
    p['enc_g1'], p['enc_b1'] = jnp.ones((1, D)), jnp.zeros((1, D))
    p['enc_w1'], p['enc_c1'] = n((D, F)), jnp.zeros((1, F))
    p['enc_w2'], p['enc_c2'] = n((F, D)), jnp.zeros((1, D))
    p['enc_g2'], p['enc_b2'] = jnp.ones((1, D)), jnp.zeros((1, D))
    # GRU-attention decoder (weights pre-transposed: y = x @ W + b)
    p['dec_wr'], p['dec_br'] = n((3 * D, D)), jnp.zeros((1, D))
    p['dec_wu'], p['dec_bu'] = n((3 * D, D)), jnp.zeros((1, D))
    p['dec_wh'], p['dec_bh'] = n((3 * D, D)), jnp.zeros((1, D))
    p['dec_wo'], p['dec_bo'] = n((D, D)), jnp.zeros((1, D))
    p['dec_wc'], p['dec_bc'] = n((D, D)), jnp.zeros((1, D))
    p['dec_wm'], p['dec_bm'] = n((D, 1)), jnp.zeros((1, 1))
    p['dec_init_h'] = n((1, D), s=0.1)
    return p


def my_model_forward(params, input_ids, input_mask, input_seg,
                     decode_input, decode_target):
    B, S = input_ids.shape
    mask_f = input_mask.astype(jnp.float32)

    # embeddings (glue)
    emb = (jnp.take(params['word_emb'], input_ids, axis=0)
           + jnp.take(params['seg_emb'], input_seg, axis=0)
           + params['pos_emb'][None, :S, :])

    encoder_rep = run_encoder(emb, mask_f, params)                  # (B, S, D)

    dec_emb_tm = jnp.transpose(
        jnp.take(params['word_emb'], decode_input, axis=0), (1, 0, 2))  # (T, B, D)

    hs_tm = run_decoder_gru(encoder_rep, mask_f, dec_emb_tm, params)    # (T, B, D)
    hs = jnp.transpose(hs_tm, (1, 0, 2))                                # (B, T, D)

    loss_bt = run_decoder_output(hs, encoder_rep, mask_f,
                                 input_ids.astype(jnp.int32),
                                 decode_target.astype(jnp.int32), params)  # (B, T)

    count = jnp.sum((decode_target != 0).astype(jnp.float32))
    loss = jnp.sum(loss_bt) / count
    return jnp.broadcast_to(loss, (B,))                 # batch-mean repeated, as in torch


# ----------------------------- main -----------------------------------------------

if __name__ == "__main__":
    B, S, D, V, T, F = 2, 8, 32, 64, 8, 64

    params = init_params(jax.random.PRNGKey(0), D=D, V=V, F=F, S=S)

    k1, k2, k3 = jax.random.split(jax.random.PRNGKey(0), 3)
    input_ids = jax.random.randint(k1, (B, S), 1, V, dtype=jnp.int32)
    input_mask = jnp.ones((B, S), jnp.float32).at[1, S - 2:].set(0.0)
    input_seg = jnp.zeros((B, S), jnp.int32)
    decode_input = jax.random.randint(k2, (B, T), 1, V, dtype=jnp.int32)
    decode_target = jax.random.randint(k3, (B, T), 0, V, dtype=jnp.int32)
    decode_target = decode_target.at[:, 0].set(5)   # guarantee nonzero targets

    forward = jax.jit(my_model_forward)
    loss = forward(params, input_ids, input_mask, input_seg,
                   decode_input, decode_target)
    jax.block_until_ready(loss)
    assert loss.shape == (B,)
    assert bool(jnp.all(jnp.isfinite(loss)))
    print("KERNEL_OK")
</pallas_src>

<mosaic_0001>
module attributes {stable_mosaic.version = 11 : i64} {
  func.func @encoder_kernel(%arg0: i32, %arg1: memref<1x8x32xf32, #tpu.memory_space<vmem>>, %arg2: memref<1x1x8xf32, #tpu.memory_space<vmem>>, %arg3: memref<32x32xbf16, #tpu.memory_space<vmem>>, %arg4: memref<32x32xbf16, #tpu.memory_space<vmem>>, %arg5: memref<32x32xbf16, #tpu.memory_space<vmem>>, %arg6: memref<32x32xbf16, #tpu.memory_space<vmem>>, %arg7: memref<1x32xf32, #tpu.memory_space<vmem>>, %arg8: memref<1x32xf32, #tpu.memory_space<vmem>>, %arg9: memref<32x64xbf16, #tpu.memory_space<vmem>>, %arg10: memref<1x64xf32, #tpu.memory_space<vmem>>, %arg11: memref<64x32xbf16, #tpu.memory_space<vmem>>, %arg12: memref<1x32xf32, #tpu.memory_space<vmem>>, %arg13: memref<1x32xf32, #tpu.memory_space<vmem>>, %arg14: memref<1x32xf32, #tpu.memory_space<vmem>>, %arg15: memref<1x8x32xf32, #tpu.memory_space<vmem>>) attributes {dimension_semantics = [#tpu.dimension_semantics<parallel>], iteration_bounds = array<i64: 2>, scalar_prefetch = 0 : i64, scratch_operands = 0 : i64, tpu.core_type = #tpu.core_type<tc>, window_params = [{transform_indices = @transform_0, window_bounds = array<i64: 1, 8, 32>}, {transform_indices = @transform_1, window_bounds = array<i64: 1, 1, 8>}, {pipeline_mode = #tpu.pipeline_mode<synchronous>, transform_indices = @transform_2, window_bounds = array<i64: 32, 32>}, {pipeline_mode = #tpu.pipeline_mode<synchronous>, transform_indices = @transform_3, window_bounds = array<i64: 32, 32>}, {pipeline_mode = #tpu.pipeline_mode<synchronous>, transform_indices = @transform_4, window_bounds = array<i64: 32, 32>}, {pipeline_mode = #tpu.pipeline_mode<synchronous>, transform_indices = @transform_5, window_bounds = array<i64: 32, 32>}, {pipeline_mode = #tpu.pipeline_mode<synchronous>, transform_indices = @transform_6, window_bounds = array<i64: 1, 32>}, {pipeline_mode = #tpu.pipeline_mode<synchronous>, transform_indices = @transform_7, window_bounds = array<i64: 1, 32>}, {pipeline_mode = #tpu.pipeline_mode<synchronous>, transform_indices = @transform_8, window_bounds = array<i64: 32, 64>}, {pipeline_mode = #tpu.pipeline_mode<synchronous>, transform_indices = @transform_9, window_bounds = array<i64: 1, 64>}, {pipeline_mode = #tpu.pipeline_mode<synchronous>, transform_indices = @transform_10, window_bounds = array<i64: 64, 32>}, {pipeline_mode = #tpu.pipeline_mode<synchronous>, transform_indices = @transform_11, window_bounds = array<i64: 1, 32>}, {pipeline_mode = #tpu.pipeline_mode<synchronous>, transform_indices = @transform_12, window_bounds = array<i64: 1, 32>}, {pipeline_mode = #tpu.pipeline_mode<synchronous>, transform_indices = @transform_13, window_bounds = array<i64: 1, 32>}, {transform_indices = @transform_14, window_bounds = array<i64: 1, 8, 32>}]} {
    %c0 = arith.constant 0 : index
    %c0_0 = arith.constant 0 : index
    %c0_1 = arith.constant 0 : index
    %0 = vector.load %arg1[%c0, %c0_0, %c0_1] : memref<1x8x32xf32, #tpu.memory_space<vmem>>, vector<1x8x32xf32>
    %1 = vector.shape_cast %0 : vector<1x8x32xf32> to vector<8x32xf32>
    %c0_2 = arith.constant 0 : index
    %c0_3 = arith.constant 0 : index
    %c0_4 = arith.constant 0 : index
    %2 = vector.load %arg2[%c0_2, %c0_3, %c0_4] : memref<1x1x8xf32, #tpu.memory_space<vmem>>, vector<1x1x8xf32>
    %3 = vector.shape_cast %2 : vector<1x1x8xf32> to vector<1x8xf32>
    %cst = arith.constant 1.000000e+00 : f32
    %4 = vector.broadcast %cst : f32 to vector<1x8xf32>
    %5 = arith.subf %4, %3 : vector<1x8xf32>
    %cst_5 = arith.constant -1.000000e+30 : f32
    %6 = vector.broadcast %cst_5 : f32 to vector<1x8xf32>
    %7 = arith.mulf %5, %6 : vector<1x8xf32>
    %cst_6 = arith.constant 3.200000e+01 : f32
    %8 = math.sqrt %cst_6 : f32
    %cst_7 = arith.constant 1.000000e+00 : f32
    %9 = arith.divf %cst_7, %8 : f32
    %10 = arith.truncf %1 : vector<8x32xf32> to vector<8x32xbf16>
    %c0_8 = arith.constant 0 : index
    %c0_9 = arith.constant 0 : index
    %11 = vector.load %arg3[%c0_8, %c0_9] : memref<32x32xbf16, #tpu.memory_space<vmem>>, vector<32x32xbf16>
    %cst_10 = arith.constant dense<0.000000e+00> : vector<8x32xf32>
    %12 = tpu.matmul %10, %11, %cst_10 {dimension_numbers = #tpu.dot_dimension_numbers<[1], [0], [0], [1], [0, 0, 1, 1], [], []>} : vector<8x32xbf16>, vector<32x32xbf16>, vector<8x32xf32> -> vector<8x32xf32>
    %c0_11 = arith.constant 0 : index
    %c0_12 = arith.constant 0 : index
    %13 = vector.load %arg4[%c0_11, %c0_12] : memref<32x32xbf16, #tpu.memory_space<vmem>>, vector<32x32xbf16>
    %cst_13 = arith.constant dense<0.000000e+00> : vector<8x32xf32>
    %14 = tpu.matmul %10, %13, %cst_13 {dimension_numbers = #tpu.dot_dimension_numbers<[1], [0], [0], [1], [0, 0, 1, 1], [], []>} : vector<8x32xbf16>, vector<32x32xbf16>, vector<8x32xf32> -> vector<8x32xf32>
    %c0_14 = arith.constant 0 : index
    %c0_15 = arith.constant 0 : index
    %15 = vector.load %arg5[%c0_14, %c0_15] : memref<32x32xbf16, #tpu.memory_space<vmem>>, vector<32x32xbf16>
    %cst_16 = arith.constant dense<0.000000e+00> : vector<8x32xf32>
    %16 = tpu.matmul %10, %15, %cst_16 {dimension_numbers = #tpu.dot_dimension_numbers<[1], [0], [0], [1], [0, 0, 1, 1], [], []>} : vector<8x32xbf16>, vector<32x32xbf16>, vector<8x32xf32> -> vector<8x32xf32>
    %17 = arith.truncf %12 : vector<8x32xf32> to vector<8x32xbf16>
    %18 = arith.truncf %14 : vector<8x32xf32> to vector<8x32xbf16>
    %cst_17 = arith.constant dense<0.000000e+00> : vector<8x8xf32>
    %19 = tpu.matmul %17, %18, %cst_17 {dimension_numbers = #tpu.dot_dimension_numbers<[1], [1], [0], [0], [0, 0, 1, 0], [], []>} : vector<8x32xbf16>, vector<8x32xbf16>, vector<8x8xf32> -> vector<8x8xf32>
    %20 = vector.broadcast %9 : f32 to vector<8x8xf32>
    %21 = arith.mulf %19, %20 : vector<8x8xf32>
    %22 = vector.broadcast %7 : vector<1x8xf32> to vector<8x8xf32>
    %23 = arith.addf %21, %22 : vector<8x8xf32>
    %cst_18 = arith.constant dense<0xFF800000> : vector<8xf32>
    %24 = vector.multi_reduction <maximumf>, %23, %cst_18 [1] : vector<8x8xf32> to vector<8xf32>
    %25 = vector.shape_cast %24 : vector<8xf32> to vector<8x1xf32>
    %26 = vector.broadcast %25 : vector<8x1xf32> to vector<8x8xf32>
    %27 = arith.subf %23, %26 : vector<8x8xf32>
    %28 = math.exp %27 : vector<8x8xf32>
    %cst_19 = arith.constant dense<0.000000e+00> : vector<8xf32>
    %29 = vector.multi_reduction <add>, %28, %cst_19 [1] : vector<8x8xf32> to vector<8xf32>
    %30 = vector.shape_cast %29 : vector<8xf32> to vector<8x1xf32>
    %31 = tpu.reciprocal %30 {approx = true} : vector<8x1xf32> -> vector<8x1xf32>
    %32 = vector.broadcast %31 : vector<8x1xf32> to vector<8x8xf32>
    %33 = arith.mulf %28, %32 : vector<8x8xf32>
    %34 = arith.truncf %33 : vector<8x8xf32> to vector<8x8xbf16>
    %35 = arith.truncf %16 : vector<8x32xf32> to vector<8x32xbf16>
    %cst_20 = arith.constant dense<0.000000e+00> : vector<8x32xf32>
    %36 = tpu.matmul %34, %35, %cst_20 {dimension_numbers = #tpu.dot_dimension_numbers<[1], [0], [0], [1], [0, 0, 1, 1], [], []>} : vector<8x8xbf16>, vector<8x32xbf16>, vector<8x32xf32> -> vector<8x32xf32>
    %37 = arith.truncf %36 : vector<8x32xf32> to vector<8x32xbf16>
    %c0_21 = arith.constant 0 : index
    %c0_22 = arith.constant 0 : index
    %38 = vector.load %arg6[%c0_21, %c0_22] : memref<32x32xbf16, #tpu.memory_space<vmem>>, vector<32x32xbf16>
    %cst_23 = arith.constant dense<0.000000e+00> : vector<8x32xf32>
    %39 = tpu.matmul %37, %38, %cst_23 {dimension_numbers = #tpu.dot_dimension_numbers<[1], [0], [0], [1], [0, 0, 1, 1], [], []>} : vector<8x32xbf16>, vector<32x32xbf16>, vector<8x32xf32> -> vector<8x32xf32>
    %40 = arith.addf %1, %39 : vector<8x32xf32>
    %c0_24 = arith.constant 0 : index
    %c0_25 = arith.constant 0 : index
    %41 = vector.load %arg7[%c0_24, %c0_25] : memref<1x32xf32, #tpu.memory_space<vmem>>, vector<1x32xf32>
    %c0_26 = arith.constant 0 : index
    %c0_27 = arith.constant 0 : index
    %42 = vector.load %arg8[%c0_26, %c0_27] : memref<1x32xf32, #tpu.memory_space<vmem>>, vector<1x32xf32>
    %cst_28 = arith.constant dense<0.000000e+00> : vector<8xf32>
    %43 = vector.multi_reduction <add>, %40, %cst_28 [1] : vector<8x32xf32> to vector<8xf32>
    %44 = vector.shape_cast %43 : vector<8xf32> to vector<8x1xf32>
    %cst_29 = arith.constant 3.200000e+01 : f32
    %45 = vector.broadcast %cst_29 : f32 to vector<8x1xf32>
    %46 = arith.divf %44, %45 : vector<8x1xf32>
    %47 = vector.broadcast %46 : vector<8x1xf32> to vector<8x32xf32>
    %48 = arith.subf %40, %47 : vector<8x32xf32>
    %49 = arith.mulf %48, %48 : vector<8x32xf32>
    %cst_30 = arith.constant dense<0.000000e+00> : vector<8xf32>
    %50 = vector.multi_reduction <add>, %49, %cst_30 [1] : vector<8x32xf32> to vector<8xf32>
    %51 = vector.shape_cast %50 : vector<8xf32> to vector<8x1xf32>
    %cst_31 = arith.constant 3.200000e+01 : f32
    %52 = vector.broadcast %cst_31 : f32 to vector<8x1xf32>
    %53 = arith.divf %51, %52 : vector<8x1xf32>
    %54 = vector.broadcast %46 : vector<8x1xf32> to vector<8x32xf32>
    %55 = arith.subf %40, %54 : vector<8x32xf32>
    %cst_32 = arith.constant 9.99999996E-13 : f32
    %56 = vector.broadcast %cst_32 : f32 to vector<8x1xf32>
    %57 = arith.addf %53, %56 : vector<8x1xf32>
    %58 = math.rsqrt %57 : vector<8x1xf32>
    %59 = vector.broadcast %58 : vector<8x1xf32> to vector<8x32xf32>
    %60 = arith.mulf %55, %59 : vector<8x32xf32>
    %61 = vector.broadcast %41 : vector<1x32xf32> to vector<8x32xf32>
    %62 = arith.mulf %60, %61 : vector<8x32xf32>
    %63 = vector.broadcast %42 : vector<1x32xf32> to vector<8x32xf32>
    %64 = arith.addf %62, %63 : vector<8x32xf32>
    %65 = arith.truncf %64 : vector<8x32xf32> to vector<8x32xbf16>
    %c0_33 = arith.constant 0 : index
    %c0_34 = arith.constant 0 : index
    %66 = vector.load %arg9[%c0_33, %c0_34] : memref<32x64xbf16, #tpu.memory_space<vmem>>, vector<32x64xbf16>
    %cst_35 = arith.constant dense<0.000000e+00> : vector<8x64xf32>
    %67 = tpu.matmul %65, %66, %cst_35 {dimension_numbers = #tpu.dot_dimension_numbers<[1], [0], [0], [1], [0, 0, 1, 1], [], []>} : vector<8x32xbf16>, vector<32x64xbf16>, vector<8x64xf32> -> vector<8x64xf32>
    %c0_36 = arith.constant 0 : index
    %c0_37 = arith.constant 0 : index
    %68 = vector.load %arg10[%c0_36, %c0_37] : memref<1x64xf32, #tpu.memory_space<vmem>>, vector<1x64xf32>
    %69 = vector.broadcast %68 : vector<1x64xf32> to vector<8x64xf32>
    %70 = arith.addf %67, %69 : vector<8x64xf32>
    %71 = arith.mulf %70, %70 : vector<8x64xf32>
    %72 = arith.mulf %70, %71 : vector<8x64xf32>
    %cst_38 = arith.constant 4.471500e-02 : f32
    %73 = vector.broadcast %cst_38 : f32 to vector<8x64xf32>
    %74 = arith.mulf %73, %72 : vector<8x64xf32>
    %75 = arith.addf %70, %74 : vector<8x64xf32>
    %cst_39 = arith.constant 0.797884583 : f32
    %76 = vector.broadcast %cst_39 : f32 to vector<8x64xf32>
    %77 = arith.mulf %76, %75 : vector<8x64xf32>
    %78 = math.tanh %77 : vector<8x64xf32>
    %cst_40 = arith.constant 1.000000e+00 : f32
    %79 = vector.broadcast %cst_40 : f32 to vector<8x64xf32>
    %80 = arith.addf %79, %78 : vector<8x64xf32>
    %cst_41 = arith.constant 5.000000e-01 : f32
    %81 = vector.broadcast %cst_41 : f32 to vector<8x64xf32>
    %82 = arith.mulf %81, %80 : vector<8x64xf32>
    %83 = arith.mulf %70, %82 : vector<8x64xf32>
    %84 = arith.truncf %83 : vector<8x64xf32> to vector<8x64xbf16>
    %c0_42 = arith.constant 0 : index
    %c0_43 = arith.constant 0 : index
    %85 = vector.load %arg11[%c0_42, %c0_43] : memref<64x32xbf16, #tpu.memory_space<vmem>>, vector<64x32xbf16>
    %cst_44 = arith.constant dense<0.000000e+00> : vector<8x32xf32>
    %86 = tpu.matmul %84, %85, %cst_44 {dimension_numbers = #tpu.dot_dimension_numbers<[1], [0], [0], [1], [0, 0, 1, 1], [], []>} : vector<8x64xbf16>, vector<64x32xbf16>, vector<8x32xf32> -> vector<8x32xf32>
    %c0_45 = arith.constant 0 : index
    %c0_46 = arith.constant 0 : index
    %87 = vector.load %arg12[%c0_45, %c0_46] : memref<1x32xf32, #tpu.memory_space<vmem>>, vector<1x32xf32>
    %88 = vector.broadcast %87 : vector<1x32xf32> to vector<8x32xf32>
    %89 = arith.addf %86, %88 : vector<8x32xf32>
    %90 = arith.addf %64, %89 : vector<8x32xf32>
    %c0_47 = arith.constant 0 : index
    %c0_48 = arith.constant 0 : index
    %91 = vector.load %arg13[%c0_47, %c0_48] : memref<1x32xf32, #tpu.memory_space<vmem>>, vector<1x32xf32>
    %c0_49 = arith.constant 0 : index
    %c0_50 = arith.constant 0 : index
    %92 = vector.load %arg14[%c0_49, %c0_50] : memref<1x32xf32, #tpu.memory_space<vmem>>, vector<1x32xf32>
    %cst_51 = arith.constant dense<0.000000e+00> : vector<8xf32>
    %93 = vector.multi_reduction <add>, %90, %cst_51 [1] : vector<8x32xf32> to vector<8xf32>
    %94 = vector.shape_cast %93 : vector<8xf32> to vector<8x1xf32>
    %cst_52 = arith.constant 3.200000e+01 : f32
    %95 = vector.broadcast %cst_52 : f32 to vector<8x1xf32>
    %96 = arith.divf %94, %95 : vector<8x1xf32>
    %97 = vector.broadcast %96 : vector<8x1xf32> to vector<8x32xf32>
    %98 = arith.subf %90, %97 : vector<8x32xf32>
    %99 = arith.mulf %98, %98 : vector<8x32xf32>
    %cst_53 = arith.constant dense<0.000000e+00> : vector<8xf32>
    %100 = vector.multi_reduction <add>, %99, %cst_53 [1] : vector<8x32xf32> to vector<8xf32>
    %101 = vector.shape_cast %100 : vector<8xf32> to vector<8x1xf32>
    %cst_54 = arith.constant 3.200000e+01 : f32
    %102 = vector.broadcast %cst_54 : f32 to vector<8x1xf32>
    %103 = arith.divf %101, %102 : vector<8x1xf32>
    %104 = vector.broadcast %96 : vector<8x1xf32> to vector<8x32xf32>
    %105 = arith.subf %90, %104 : vector<8x32xf32>
    %cst_55 = arith.constant 9.99999996E-13 : f32
    %106 = vector.broadcast %cst_55 : f32 to vector<8x1xf32>
    %107 = arith.addf %103, %106 : vector<8x1xf32>
    %108 = math.rsqrt %107 : vector<8x1xf32>
    %109 = vector.broadcast %108 : vector<8x1xf32> to vector<8x32xf32>
    %110 = arith.mulf %105, %109 : vector<8x32xf32>
    %111 = vector.broadcast %91 : vector<1x32xf32> to vector<8x32xf32>
    %112 = arith.mulf %110, %111 : vector<8x32xf32>
    %113 = vector.broadcast %92 : vector<1x32xf32> to vector<8x32xf32>
    %114 = arith.addf %112, %113 : vector<8x32xf32>
    %c0_56 = arith.constant 0 : index
    %c0_57 = arith.constant 0 : index
    %c0_58 = arith.constant 0 : index
    %115 = vector.load %arg15[%c0_56, %c0_57, %c0_58] : memref<1x8x32xf32, #tpu.memory_space<vmem>>, vector<1x8x32xf32>
    %116 = vector.shape_cast %115 : vector<1x8x32xf32> to vector<8x32xf32>
    %117 = vector.shape_cast %114 : vector<8x32xf32> to vector<1x8x32xf32>
    tpu.vector_store %arg15[%c0_56, %c0_57, %c0_58], %117 {strides = array<i32>} : memref<1x8x32xf32, #tpu.memory_space<vmem>>, vector<1x8x32xf32>,
    return
  }
  func.func @transform_0(%arg0: i32) -> (i32, i32, i32) {
    %c0_i32 = arith.constant 0 : i32
    %c0_i32_0 = arith.constant 0 : i32
    %c0_i32_1 = arith.constant 0 : i32
    return %arg0, %c0_i32, %c0_i32_0 : i32, i32, i32
  }
  func.func @transform_1(%arg0: i32) -> (i32, i32, i32) {
    %c0_i32 = arith.constant 0 : i32
    %c0_i32_0 = arith.constant 0 : i32
    %c0_i32_1 = arith.constant 0 : i32
    return %arg0, %c0_i32, %c0_i32_0 : i32, i32, i32
  }
  func.func @transform_2(%arg0: i32) -> (i32, i32) {
    %c0_i32 = arith.constant 0 : i32
    %c0_i32_0 = arith.constant 0 : i32
    %c0_i32_1 = arith.constant 0 : i32
    return %c0_i32, %c0_i32_0 : i32, i32
  }
  func.func @transform_3(%arg0: i32) -> (i32, i32) {
    %c0_i32 = arith.constant 0 : i32
    %c0_i32_0 = arith.constant 0 : i32
    %c0_i32_1 = arith.constant 0 : i32
    return %c0_i32, %c0_i32_0 : i32, i32
  }
  func.func @transform_4(%arg0: i32) -> (i32, i32) {
    %c0_i32 = arith.constant 0 : i32
    %c0_i32_0 = arith.constant 0 : i32
    %c0_i32_1 = arith.constant 0 : i32
    return %c0_i32, %c0_i32_0 : i32, i32
  }
  func.func @transform_5(%arg0: i32) -> (i32, i32) {
    %c0_i32 = arith.constant 0 : i32
    %c0_i32_0 = arith.constant 0 : i32
    %c0_i32_1 = arith.constant 0 : i32
    return %c0_i32, %c0_i32_0 : i32, i32
  }
  func.func @transform_6(%arg0: i32) -> (i32, i32) {
    %c0_i32 = arith.constant 0 : i32
    %c0_i32_0 = arith.constant 0 : i32
    %c0_i32_1 = arith.constant 0 : i32
    return %c0_i32, %c0_i32_0 : i32, i32
  }
  func.func @transform_7(%arg0: i32) -> (i32, i32) {
    %c0_i32 = arith.constant 0 : i32
    %c0_i32_0 = arith.constant 0 : i32
    %c0_i32_1 = arith.constant 0 : i32
    return %c0_i32, %c0_i32_0 : i32, i32
  }
  func.func @transform_8(%arg0: i32) -> (i32, i32) {
    %c0_i32 = arith.constant 0 : i32
    %c0_i32_0 = arith.constant 0 : i32
    %c0_i32_1 = arith.constant 0 : i32
    return %c0_i32, %c0_i32_0 : i32, i32
  }
  func.func @transform_9(%arg0: i32) -> (i32, i32) {
    %c0_i32 = arith.constant 0 : i32
    %c0_i32_0 = arith.constant 0 : i32
    %c0_i32_1 = arith.constant 0 : i32
    return %c0_i32, %c0_i32_0 : i32, i32
  }
  func.func @transform_10(%arg0: i32) -> (i32, i32) {
    %c0_i32 = arith.constant 0 : i32
    %c0_i32_0 = arith.constant 0 : i32
    %c0_i32_1 = arith.constant 0 : i32
    return %c0_i32, %c0_i32_0 : i32, i32
  }
  func.func @transform_11(%arg0: i32) -> (i32, i32) {
    %c0_i32 = arith.constant 0 : i32
    %c0_i32_0 = arith.constant 0 : i32
    %c0_i32_1 = arith.constant 0 : i32
    return %c0_i32, %c0_i32_0 : i32, i32
  }
  func.func @transform_12(%arg0: i32) -> (i32, i32) {
    %c0_i32 = arith.constant 0 : i32
    %c0_i32_0 = arith.constant 0 : i32
    %c0_i32_1 = arith.constant 0 : i32
    return %c0_i32, %c0_i32_0 : i32, i32
  }
  func.func @transform_13(%arg0: i32) -> (i32, i32) {
    %c0_i32 = arith.constant 0 : i32
    %c0_i32_0 = arith.constant 0 : i32
    %c0_i32_1 = arith.constant 0 : i32
    return %c0_i32, %c0_i32_0 : i32, i32
  }
  func.func @transform_14(%arg0: i32) -> (i32, i32, i32) {
    %c0_i32 = arith.constant 0 : i32
    %c0_i32_0 = arith.constant 0 : i32
    %c0_i32_1 = arith.constant 0 : i32
    return %arg0, %c0_i32, %c0_i32_0 : i32, i32, i32
  }
}

module attributes {stable_mosaic.version = 11 : i64} {
  func.func @decoder_gru_kernel(%arg0: memref<2x8x32xf32, #tpu.memory_space<vmem>>, %arg1: memref<2x8xf32, #tpu.memory_space<vmem>>, %arg2: memref<8x2x32xf32, #tpu.memory_space<vmem>>, %arg3: memref<32x96xbf16, #tpu.memory_space<vmem>>, %arg4: memref<32x96xbf16, #tpu.memory_space<vmem>>, %arg5: memref<32x64xbf16, #tpu.memory_space<vmem>>, %arg6: memref<32x32xbf16, #tpu.memory_space<vmem>>, %arg7: memref<1x96xf32, #tpu.memory_space<vmem>>, %arg8: memref<1x32xf32, #tpu.memory_space<vmem>>, %arg9: memref<8x2x32xf32, #tpu.memory_space<vmem>>, %arg10: memref<2x32xf32, #tpu.memory_space<vmem>>) attributes {dimension_semantics = [], scalar_prefetch = 0 : i64, scratch_operands = 1 : i64, tpu.core_type = #tpu.core_type<tc>} {
    %c0 = arith.constant 0 : index
    %c0_0 = arith.constant 0 : index
    %c0_1 = arith.constant 0 : index
    %0 = vector.load %arg0[%c0, %c0_0, %c0_1] : memref<2x8x32xf32, #tpu.memory_space<vmem>>, vector<2x8x32xf32>
    %cst = arith.constant 3.200000e+01 : f32
    %1 = math.sqrt %cst : f32
    %cst_2 = arith.constant 1.000000e+00 : f32
    %2 = arith.divf %cst_2, %1 : f32
    %3 = arith.truncf %0 : vector<2x8x32xf32> to vector<2x8x32xbf16>
    %c0_3 = arith.constant 0 : index
    %c0_4 = arith.constant 0 : index
    %4 = vector.load %arg1[%c0_3, %c0_4] : memref<2x8xf32, #tpu.memory_space<vmem>>, vector<2x8xf32>
    %cst_5 = arith.constant 1.000000e+00 : f32
    %5 = vector.broadcast %cst_5 : f32 to vector<2x8xf32>
    %6 = arith.subf %5, %4 : vector<2x8xf32>
    %cst_6 = arith.constant -1.000000e+30 : f32
    %7 = vector.broadcast %cst_6 : f32 to vector<2x8xf32>
    %8 = arith.mulf %6, %7 : vector<2x8xf32>
    %c0_7 = arith.constant 0 : index
    %c0_8 = arith.constant 0 : index
    %9 = vector.load %arg3[%c0_7, %c0_8] : memref<32x96xbf16, #tpu.memory_space<vmem>>, vector<32x96xbf16>
    %c0_9 = arith.constant 0 : index
    %c0_10 = arith.constant 0 : index
    %10 = vector.load %arg4[%c0_9, %c0_10] : memref<32x96xbf16, #tpu.memory_space<vmem>>, vector<32x96xbf16>
    %c0_11 = arith.constant 0 : index
    %c0_12 = arith.constant 0 : index
    %11 = vector.load %arg5[%c0_11, %c0_12] : memref<32x64xbf16, #tpu.memory_space<vmem>>, vector<32x64xbf16>
    %c0_13 = arith.constant 0 : index
    %c0_14 = arith.constant 0 : index
    %12 = vector.load %arg6[%c0_13, %c0_14] : memref<32x32xbf16, #tpu.memory_space<vmem>>, vector<32x32xbf16>
    %c0_15 = arith.constant 0 : index
    %c0_16 = arith.constant 0 : index
    %13 = vector.load %arg7[%c0_15, %c0_16] : memref<1x96xf32, #tpu.memory_space<vmem>>, vector<1x96xf32>
    %c0_17 = arith.constant 0 : index
    %c0_18 = arith.constant 0 : index
    %14 = vector.load %arg8[%c0_17, %c0_18] : memref<1x32xf32, #tpu.memory_space<vmem>>, vector<1x32xf32>
    %15 = vector.shape_cast %14 : vector<1x32xf32> to vector<1x32xf32>
    %16 = vector.broadcast %15 : vector<1x32xf32> to vector<2x32xf32>
    %c0_19 = arith.constant 0 : index
    %c0_20 = arith.constant 0 : index
    %17 = vector.load %arg10[%c0_19, %c0_20] : memref<2x32xf32, #tpu.memory_space<vmem>>, vector<2x32xf32>
    tpu.vector_store %arg10[%c0_19, %c0_20], %16 {strides = array<i32>} : memref<2x32xf32, #tpu.memory_space<vmem>>, vector<2x32xf32>,
    %c0_i32 = arith.constant 0 : i32
    %c8_i32 = arith.constant 8 : i32
    %18 = arith.addi %c0_i32, %c8_i32 : i32
    %c1_i32 = arith.constant 1 : i32
    scf.for %arg11 = %c0_i32 to %18 step %c1_i32  : i32 {
      %c1_i32_22 = arith.constant 1 : i32
      %19 = arith.muli %arg11, %c1_i32_22 : i32
      %c0_i32_23 = arith.constant 0 : i32
      %20 = arith.addi %c0_i32_23, %19 : i32
      %c0_24 = arith.constant 0 : index
      %c0_25 = arith.constant 0 : index
      %21 = vector.load %arg10[%c0_24, %c0_25] : memref<2x32xf32, #tpu.memory_space<vmem>>, vector<2x32xf32>
      %22 = arith.truncf %21 : vector<2x32xf32> to vector<2x32xbf16>
      %23 = vector.shape_cast %22 : vector<2x32xbf16> to vector<2x1x32xbf16>
      "tpu.trace_start"() <{level = 10 : i32, message = "bud,bsd->bus"}> : () -> ()
      %cst_26 = arith.constant dense<0.000000e+00> : vector<2x1x8xf32>
      %24 = tpu.matmul %23, %3, %cst_26 {dimension_numbers = #tpu.dot_dimension_numbers<[2], [2], [1], [1], [0, 0, 0, 1, 1, 1], [0], [0]>} : vector<2x1x32xbf16>, vector<2x8x32xbf16>, vector<2x1x8xf32> -> vector<2x1x8xf32>
      "tpu.trace_stop"() : () -> ()
      %25 = vector.shape_cast %24 : vector<2x1x8xf32> to vector<2x8xf32>
      %26 = vector.broadcast %2 : f32 to vector<2x8xf32>
      %27 = arith.mulf %25, %26 : vector<2x8xf32>
      %28 = arith.addf %27, %8 : vector<2x8xf32>
      %cst_27 = arith.constant dense<0xFF800000> : vector<2xf32>
      %29 = vector.multi_reduction <maximumf>, %28, %cst_27 [1] : vector<2x8xf32> to vector<2xf32>
      %30 = vector.shape_cast %29 : vector<2xf32> to vector<2x1xf32>
      %31 = vector.broadcast %30 : vector<2x1xf32> to vector<2x8xf32>
      %32 = arith.subf %28, %31 : vector<2x8xf32>
      %33 = math.exp %32 : vector<2x8xf32>
      %cst_28 = arith.constant dense<0.000000e+00> : vector<2xf32>
      %34 = vector.multi_reduction <add>, %33, %cst_28 [1] : vector<2x8xf32> to vector<2xf32>
      %35 = vector.shape_cast %34 : vector<2xf32> to vector<2x1xf32>
      %36 = tpu.reciprocal %35 {approx = true} : vector<2x1xf32> -> vector<2x1xf32>
      %37 = vector.broadcast %36 : vector<2x1xf32> to vector<2x8xf32>
      %38 = arith.mulf %33, %37 : vector<2x8xf32>
      %39 = arith.truncf %38 : vector<2x8xf32> to vector<2x8xbf16>
      %40 = vector.shape_cast %39 : vector<2x8xbf16> to vector<2x1x8xbf16>
      "tpu.trace_start"() <{level = 10 : i32, message = "bus,bsd->bud"}> : () -> ()
      %cst_29 = arith.constant dense<0.000000e+00> : vector<2x1x32xf32>
      %41 = tpu.matmul %40, %3, %cst_29 {dimension_numbers = #tpu.dot_dimension_numbers<[2], [1], [1], [2], [0, 0, 0, 1, 1, 2], [0], [0]>} : vector<2x1x8xbf16>, vector<2x8x32xbf16>, vector<2x1x32xf32> -> vector<2x1x32xf32>
      "tpu.trace_stop"() : () -> ()
      %42 = vector.shape_cast %41 : vector<2x1x32xf32> to vector<2x32xf32>
      %43 = arith.index_cast %20 : i32 to index
      %c0_30 = arith.constant 0 : index
      %c0_31 = arith.constant 0 : index
      %44 = vector.load %arg2[%43, %c0_30, %c0_31] : memref<8x2x32xf32, #tpu.memory_space<vmem>>, vector<1x2x32xf32>
      %45 = vector.shape_cast %44 : vector<1x2x32xf32> to vector<2x32xf32>
      %46 = arith.truncf %42 : vector<2x32xf32> to vector<2x32xbf16>
      %cst_32 = arith.constant dense<0.000000e+00> : vector<2x96xf32>
      %47 = tpu.matmul %46, %9, %cst_32 {dimension_numbers = #tpu.dot_dimension_numbers<[1], [0], [0], [1], [0, 0, 1, 1], [], []>} : vector<2x32xbf16>, vector<32x96xbf16>, vector<2x96xf32> -> vector<2x96xf32>
      %48 = arith.truncf %45 : vector<2x32xf32> to vector<2x32xbf16>
      %cst_33 = arith.constant dense<0.000000e+00> : vector<2x96xf32>
      %49 = tpu.matmul %48, %10, %cst_33 {dimension_numbers = #tpu.dot_dimension_numbers<[1], [0], [0], [1], [0, 0, 1, 1], [], []>} : vector<2x32xbf16>, vector<32x96xbf16>, vector<2x96xf32> -> vector<2x96xf32>
      %50 = arith.addf %47, %49 : vector<2x96xf32>
      %51 = vector.broadcast %13 : vector<1x96xf32> to vector<2x96xf32>
      %52 = arith.addf %50, %51 : vector<2x96xf32>
      %cst_34 = arith.constant dense<0.000000e+00> : vector<2x64xf32>
      %53 = tpu.matmul %22, %11, %cst_34 {dimension_numbers = #tpu.dot_dimension_numbers<[1], [0], [0], [1], [0, 0, 1, 1], [], []>} : vector<2x32xbf16>, vector<32x64xbf16>, vector<2x64xf32> -> vector<2x64xf32>
      %54 = vector.extract_strided_slice %52 {offsets = [0, 0], sizes = [2, 64], strides = [1, 1]} : vector<2x96xf32> to vector<2x64xf32>
      %55 = arith.addf %54, %53 : vector<2x64xf32>
      %56 = arith.negf %55 : vector<2x64xf32>
      %57 = math.exp %56 : vector<2x64xf32>
      %cst_35 = arith.constant 1.000000e+00 : f32
      %58 = vector.broadcast %cst_35 : f32 to vector<2x64xf32>
      %59 = arith.addf %58, %57 : vector<2x64xf32>
      %60 = arith.divf %58, %59 : vector<2x64xf32>
      %61 = vector.extract_strided_slice %60 {offsets = [0, 0], sizes = [2, 32], strides = [1, 1]} : vector<2x64xf32> to vector<2x32xf32>
      %62 = vector.extract_strided_slice %60 {offsets = [0, 32], sizes = [2, 32], strides = [1, 1]} : vector<2x64xf32> to vector<2x32xf32>
      %63 = vector.extract_strided_slice %52 {offsets = [0, 64], sizes = [2, 32], strides = [1, 1]} : vector<2x96xf32> to vector<2x32xf32>
      %64 = arith.mulf %61, %21 : vector<2x32xf32>
      %65 = arith.truncf %64 : vector<2x32xf32> to vector<2x32xbf16>
      %cst_36 = arith.constant dense<0.000000e+00> : vector<2x32xf32>
      %66 = tpu.matmul %65, %12, %cst_36 {dimension_numbers = #tpu.dot_dimension_numbers<[1], [0], [0], [1], [0, 0, 1, 1], [], []>} : vector<2x32xbf16>, vector<32x32xbf16>, vector<2x32xf32> -> vector<2x32xf32>
      %67 = arith.addf %63, %66 : vector<2x32xf32>
      %68 = math.tanh %67 : vector<2x32xf32>
      %cst_37 = arith.constant 1.000000e+00 : f32
      %69 = vector.broadcast %cst_37 : f32 to vector<2x32xf32>
      %70 = arith.subf %69, %62 : vector<2x32xf32>
      %71 = arith.mulf %70, %21 : vector<2x32xf32>
      %72 = arith.mulf %62, %68 : vector<2x32xf32>
      %73 = arith.addf %71, %72 : vector<2x32xf32>
      %c0_38 = arith.constant 0 : index
      %c0_39 = arith.constant 0 : index
      %74 = vector.load %arg10[%c0_38, %c0_39] : memref<2x32xf32, #tpu.memory_space<vmem>>, vector<2x32xf32>
      tpu.vector_store %arg10[%c0_38, %c0_39], %73 {strides = array<i32>} : memref<2x32xf32, #tpu.memory_space<vmem>>, vector<2x32xf32>,
      %75 = arith.index_cast %20 : i32 to index
      %c0_40 = arith.constant 0 : index
      %c0_41 = arith.constant 0 : index
      %76 = vector.load %arg9[%75, %c0_40, %c0_41] : memref<8x2x32xf32, #tpu.memory_space<vmem>>, vector<1x2x32xf32>
      %77 = vector.shape_cast %76 : vector<1x2x32xf32> to vector<2x32xf32>
      %78 = vector.shape_cast %73 : vector<2x32xf32> to vector<1x2x32xf32>
      tpu.vector_store %arg9[%75, %c0_40, %c0_41], %78 {strides = array<i32>} : memref<8x2x32xf32, #tpu.memory_space<vmem>>, vector<1x2x32xf32>,
    }
    %c8_i32_21 = arith.constant 8 : i32
    return
  }
}

module attributes {stable_mosaic.version = 11 : i64} {
  func.func @decoder_output_kernel(%arg0: memref<2x8x32xf32, #tpu.memory_space<vmem>>, %arg1: memref<2x8x32xf32, #tpu.memory_space<vmem>>, %arg2: memref<2x8xf32, #tpu.memory_space<vmem>>, %arg3: memref<2x8xi32, #tpu.memory_space<vmem>>, %arg4: memref<2x8xi32, #tpu.memory_space<vmem>>, %arg5: memref<32x32xbf16, #tpu.memory_space<vmem>>, %arg6: memref<1x32xf32, #tpu.memory_space<vmem>>, %arg7: memref<32x32xbf16, #tpu.memory_space<vmem>>, %arg8: memref<1x32xf32, #tpu.memory_space<vmem>>, %arg9: memref<1x32xf32, #tpu.memory_space<vmem>>, %arg10: memref<1x1xf32, #tpu.memory_space<vmem>>, %arg11: memref<32x64xbf16, #tpu.memory_space<vmem>>, %arg12: memref<2x8x1xf32, #tpu.memory_space<vmem>>) attributes {dimension_semantics = [], scalar_prefetch = 0 : i64, scratch_operands = 0 : i64, tpu.core_type = #tpu.core_type<tc>} {
    %c0 = arith.constant 0 : index
    %c0_0 = arith.constant 0 : index
    %c0_1 = arith.constant 0 : index
    %0 = vector.load %arg0[%c0, %c0_0, %c0_1] : memref<2x8x32xf32, #tpu.memory_space<vmem>>, vector<2x8x32xf32>
    %c0_2 = arith.constant 0 : index
    %c0_3 = arith.constant 0 : index
    %c0_4 = arith.constant 0 : index
    %1 = vector.load %arg1[%c0_2, %c0_3, %c0_4] : memref<2x8x32xf32, #tpu.memory_space<vmem>>, vector<2x8x32xf32>
    %c0_5 = arith.constant 0 : index
    %c0_6 = arith.constant 0 : index
    %2 = vector.load %arg2[%c0_5, %c0_6] : memref<2x8xf32, #tpu.memory_space<vmem>>, vector<2x8xf32>
    %cst = arith.constant 1.000000e+00 : f32
    %3 = vector.broadcast %cst : f32 to vector<2x8xf32>
    %4 = arith.subf %3, %2 : vector<2x8xf32>
    %cst_7 = arith.constant -1.000000e+30 : f32
    %5 = vector.broadcast %cst_7 : f32 to vector<2x8xf32>
    %6 = arith.mulf %4, %5 : vector<2x8xf32>
    %c0_8 = arith.constant 0 : index
    %c0_9 = arith.constant 0 : index
    %7 = vector.load %arg4[%c0_8, %c0_9] : memref<2x8xi32, #tpu.memory_space<vmem>>, vector<2x8xi32>
    %8 = vector.shape_cast %0 : vector<2x8x32xf32> to vector<16x32xf32>
    %9 = arith.truncf %8 : vector<16x32xf32> to vector<16x32xbf16>
    %c0_10 = arith.constant 0 : index
    %c0_11 = arith.constant 0 : index
    %10 = vector.load %arg5[%c0_10, %c0_11] : memref<32x32xbf16, #tpu.memory_space<vmem>>, vector<32x32xbf16>
    %cst_12 = arith.constant dense<0.000000e+00> : vector<16x32xf32>
    %11 = tpu.matmul %9, %10, %cst_12 {dimension_numbers = #tpu.dot_dimension_numbers<[1], [0], [0], [1], [0, 0, 1, 1], [], []>} : vector<16x32xbf16>, vector<32x32xbf16>, vector<16x32xf32> -> vector<16x32xf32>
    %c0_13 = arith.constant 0 : index
    %c0_14 = arith.constant 0 : index
    %12 = vector.load %arg6[%c0_13, %c0_14] : memref<1x32xf32, #tpu.memory_space<vmem>>, vector<1x32xf32>
    %13 = vector.broadcast %12 : vector<1x32xf32> to vector<16x32xf32>
    %14 = arith.addf %11, %13 : vector<16x32xf32>
    %15 = arith.truncf %14 : vector<16x32xf32> to vector<16x32xbf16>
    %c0_15 = arith.constant 0 : index
    %c0_16 = arith.constant 0 : index
    %16 = vector.load %arg11[%c0_15, %c0_16] : memref<32x64xbf16, #tpu.memory_space<vmem>>, vector<32x64xbf16>
    %cst_17 = arith.constant dense<0.000000e+00> : vector<16x64xf32>
    %17 = tpu.matmul %15, %16, %cst_17 {dimension_numbers = #tpu.dot_dimension_numbers<[1], [0], [0], [1], [0, 0, 1, 1], [], []>} : vector<16x32xbf16>, vector<32x64xbf16>, vector<16x64xf32> -> vector<16x64xf32>
    %18 = vector.shape_cast %17 : vector<16x64xf32> to vector<2x8x64xf32>
    %cst_18 = arith.constant dense<0xFF800000> : vector<2x8xf32>
    %19 = vector.multi_reduction <maximumf>, %18, %cst_18 [2] : vector<2x8x64xf32> to vector<2x8xf32>
    %20 = vector.shape_cast %19 : vector<2x8xf32> to vector<2x8x1xf32>
    %21 = vector.broadcast %20 : vector<2x8x1xf32> to vector<2x8x64xf32>
    %22 = arith.subf %18, %21 : vector<2x8x64xf32>
    %23 = math.exp %22 : vector<2x8x64xf32>
    %cst_19 = arith.constant dense<0.000000e+00> : vector<2x8xf32>
    %24 = vector.multi_reduction <add>, %23, %cst_19 [2] : vector<2x8x64xf32> to vector<2x8xf32>
    %25 = vector.shape_cast %24 : vector<2x8xf32> to vector<2x8x1xf32>
    %26 = tpu.iota {dimensions = array<i32: 2>} : vector<2x8x64xi32>
    %27 = vector.shape_cast %7 : vector<2x8xi32> to vector<2x8x1xi32>
    %28 = vector.broadcast %27 : vector<2x8x1xi32> to vector<2x8x64xi32>
    %29 = arith.cmpi eq, %26, %28 : vector<2x8x64xi32>
    %cst_20 = arith.constant 0.000000e+00 : f32
    %30 = vector.broadcast %cst_20 : f32 to vector<2x8x64xf32>
    %31 = arith.select %29, %18, %30 : vector<2x8x64xi1>, vector<2x8x64xf32>
    %cst_21 = arith.constant dense<0.000000e+00> : vector<2x8xf32>
    %32 = vector.multi_reduction <add>, %31, %cst_21 [2] : vector<2x8x64xf32> to vector<2x8xf32>
    %33 = vector.shape_cast %32 : vector<2x8xf32> to vector<2x8x1xf32>
    %34 = arith.subf %33, %20 : vector<2x8x1xf32>
    %35 = math.exp %34 : vector<2x8x1xf32>
    %36 = tpu.reciprocal %25 {approx = true} : vector<2x8x1xf32> -> vector<2x8x1xf32>
    %37 = arith.mulf %35, %36 : vector<2x8x1xf32>
    %c0_22 = arith.constant 0 : index
    %c0_23 = arith.constant 0 : index
    %38 = vector.load %arg7[%c0_22, %c0_23] : memref<32x32xbf16, #tpu.memory_space<vmem>>, vector<32x32xbf16>
    %cst_24 = arith.constant dense<0.000000e+00> : vector<16x32xf32>
    %39 = tpu.matmul %9, %38, %cst_24 {dimension_numbers = #tpu.dot_dimension_numbers<[1], [0], [0], [1], [0, 0, 1, 1], [], []>} : vector<16x32xbf16>, vector<32x32xbf16>, vector<16x32xf32> -> vector<16x32xf32>
    %c0_25 = arith.constant 0 : index
    %c0_26 = arith.constant 0 : index
    %40 = vector.load %arg8[%c0_25, %c0_26] : memref<1x32xf32, #tpu.memory_space<vmem>>, vector<1x32xf32>
    %41 = vector.broadcast %40 : vector<1x32xf32> to vector<16x32xf32>
    %42 = arith.addf %39, %41 : vector<16x32xf32>
    %43 = vector.shape_cast %42 : vector<16x32xf32> to vector<2x8x32xf32>
    %44 = arith.truncf %43 : vector<2x8x32xf32> to vector<2x8x32xbf16>
    %45 = arith.truncf %1 : vector<2x8x32xf32> to vector<2x8x32xbf16>
    "tpu.trace_start"() <{level = 10 : i32, message = "btd,bsd->bts"}> : () -> ()
    %cst_27 = arith.constant dense<0.000000e+00> : vector<2x8x8xf32>
    %46 = tpu.matmul %44, %45, %cst_27 {dimension_numbers = #tpu.dot_dimension_numbers<[2], [2], [1], [1], [0, 0, 0, 1, 1, 1], [0], [0]>} : vector<2x8x32xbf16>, vector<2x8x32xbf16>, vector<2x8x8xf32> -> vector<2x8x8xf32>
    "tpu.trace_stop"() : () -> ()
    %47 = vector.shape_cast %6 : vector<2x8xf32> to vector<2x1x8xf32>
    %48 = vector.broadcast %47 : vector<2x1x8xf32> to vector<2x8x8xf32>
    %49 = arith.addf %46, %48 : vector<2x8x8xf32>
    %cst_28 = arith.constant dense<0xFF800000> : vector<2x8xf32>
    %50 = vector.multi_reduction <maximumf>, %49, %cst_28 [2] : vector<2x8x8xf32> to vector<2x8xf32>
    %51 = vector.shape_cast %50 : vector<2x8xf32> to vector<2x8x1xf32>
    %52 = vector.broadcast %51 : vector<2x8x1xf32> to vector<2x8x8xf32>
    %53 = arith.subf %49, %52 : vector<2x8x8xf32>
    %54 = math.exp %53 : vector<2x8x8xf32>
    %cst_29 = arith.constant dense<0.000000e+00> : vector<2x8xf32>
    %55 = vector.multi_reduction <add>, %54, %cst_29 [2] : vector<2x8x8xf32> to vector<2x8xf32>
    %56 = vector.shape_cast %55 : vector<2x8xf32> to vector<2x8x1xf32>
    %57 = tpu.reciprocal %56 {approx = true} : vector<2x8x1xf32> -> vector<2x8x1xf32>
    %58 = vector.broadcast %57 : vector<2x8x1xf32> to vector<2x8x8xf32>
    %59 = arith.mulf %54, %58 : vector<2x8x8xf32>
    %c0_30 = arith.constant 0 : index
    %c0_31 = arith.constant 0 : index
    %60 = vector.load %arg3[%c0_30, %c0_31] : memref<2x8xi32, #tpu.memory_space<vmem>>, vector<2x8xi32>
    %61 = vector.shape_cast %60 : vector<2x8xi32> to vector<2x1x8xi32>
    %62 = vector.shape_cast %7 : vector<2x8xi32> to vector<2x8x1xi32>
    %63 = vector.broadcast %61 : vector<2x1x8xi32> to vector<2x8x8xi32>
    %64 = vector.broadcast %62 : vector<2x8x1xi32> to vector<2x8x8xi32>
    %65 = arith.cmpi eq, %63, %64 : vector<2x8x8xi32>
    %66 = arith.extui %65 : vector<2x8x8xi1> to vector<2x8x8xi32>
    %67 = arith.sitofp %66 : vector<2x8x8xi32> to vector<2x8x8xf32>
    %68 = arith.mulf %59, %67 : vector<2x8x8xf32>
    %cst_32 = arith.constant dense<0.000000e+00> : vector<2x8xf32>
    %69 = vector.multi_reduction <add>, %68, %cst_32 [2] : vector<2x8x8xf32> to vector<2x8xf32>
    %70 = vector.shape_cast %69 : vector<2x8xf32> to vector<2x8x1xf32>
    %c0_33 = arith.constant 0 : index
    %c0_34 = arith.constant 0 : index
    %71 = vector.load %arg9[%c0_33, %c0_34] : memref<1x32xf32, #tpu.memory_space<vmem>>, vector<1x32xf32>
    %72 = vector.shape_cast %71 : vector<1x32xf32> to vector<1x1x32xf32>
    %73 = vector.broadcast %72 : vector<1x1x32xf32> to vector<2x8x32xf32>
    %74 = arith.mulf %0, %73 : vector<2x8x32xf32>
    %cst_35 = arith.constant dense<0.000000e+00> : vector<2x8xf32>
    %75 = vector.multi_reduction <add>, %74, %cst_35 [2] : vector<2x8x32xf32> to vector<2x8xf32>
    %76 = vector.shape_cast %75 : vector<2x8xf32> to vector<2x8x1xf32>
    %c0_36 = arith.constant 0 : index
    %c0_37 = arith.constant 0 : index
    %77 = vector.load %arg10[%c0_36, %c0_37] : memref<1x1xf32, #tpu.memory_space<vmem>>, vector<1x1xf32>
    %78 = vector.shape_cast %77 : vector<1x1xf32> to vector<1x1x1xf32>
    %79 = vector.broadcast %78 : vector<1x1x1xf32> to vector<2x8x1xf32>
    %80 = arith.addf %76, %79 : vector<2x8x1xf32>
    %81 = arith.negf %80 : vector<2x8x1xf32>
    %82 = math.exp %81 : vector<2x8x1xf32>
    %cst_38 = arith.constant 1.000000e+00 : f32
    %83 = vector.broadcast %cst_38 : f32 to vector<2x8x1xf32>
    %84 = arith.addf %83, %82 : vector<2x8x1xf32>
    %85 = arith.divf %83, %84 : vector<2x8x1xf32>
    %86 = arith.mulf %37, %85 : vector<2x8x1xf32>
    %cst_39 = arith.constant 1.000000e+00 : f32
    %87 = vector.broadcast %cst_39 : f32 to vector<2x8x1xf32>
    %88 = arith.subf %87, %85 : vector<2x8x1xf32>
    %89 = arith.mulf %70, %88 : vector<2x8x1xf32>
    %90 = arith.addf %86, %89 : vector<2x8x1xf32>
    %91 = vector.shape_cast %7 : vector<2x8xi32> to vector<2x8x1xi32>
    %c0_i32 = arith.constant 0 : i32
    %92 = vector.broadcast %c0_i32 : i32 to vector<2x8x1xi32>
    %93 = arith.cmpi ne, %91, %92 : vector<2x8x1xi32>
    %94 = arith.extui %93 : vector<2x8x1xi1> to vector<2x8x1xi32>
    %95 = arith.sitofp %94 : vector<2x8x1xi32> to vector<2x8x1xf32>
    %cst_40 = arith.constant 9.99999997E-7 : f32
    %96 = vector.broadcast %cst_40 : f32 to vector<2x8x1xf32>
    %97 = arith.addf %90, %96 : vector<2x8x1xf32>
    %98 = math.log %97 : vector<2x8x1xf32>
    %cst_41 = arith.constant 0.000000e+00 : f32
    %99 = vector.broadcast %cst_41 : f32 to vector<2x8x1xf32>
    %100 = arith.subf %99, %98 : vector<2x8x1xf32>
    %101 = arith.mulf %100, %95 : vector<2x8x1xf32>
    %c0_42 = arith.constant 0 : index
    %c0_43 = arith.constant 0 : index
    %c0_44 = arith.constant 0 : index
    %102 = vector.load %arg12[%c0_42, %c0_43, %c0_44] : memref<2x8x1xf32, #tpu.memory_space<vmem>>, vector<2x8x1xf32>
    tpu.vector_store %arg12[%c0_42, %c0_43, %c0_44], %101 {strides = array<i32>} : memref<2x8x1xf32, #tpu.memory_space<vmem>>, vector<2x8x1xf32>,
    return
  }
}

</mosaic_0001>

<llo_original>
// kernel: my_model_forward.3
$region0: #{my_model_forward.3}
  #allocation0 [shape = 'u32[]', space=smem, size = 0x4, offset = 0x4, fixed_abs, tag = 'smem constant byte address 0x4 - core index']
  #allocation1 [shape = 'u32[144,128]{1,0:T(1,128)}', space=vmem, size = 0x12000, scoped, tag = 'internal scratch']
  %s0 = inlined_call_operand.vmem [shape: f32[2,8,32], index: 0, kind: input, shape index: {}]
  %s1 = inlined_call_operand.vmem [shape: f32[2,1,8], index: 1, kind: input, shape index: {}]
  %s2 = inlined_call_operand.vmem [shape: bf16[32,32], index: 2, kind: input, shape index: {}]
  %s3 = inlined_call_operand.vmem [shape: bf16[32,32], index: 3, kind: input, shape index: {}]
  %s4 = inlined_call_operand.vmem [shape: bf16[32,32], index: 4, kind: input, shape index: {}]
  %s5 = inlined_call_operand.vmem [shape: bf16[32,32], index: 5, kind: input, shape index: {}]
  %s6 = inlined_call_operand.vmem [shape: f32[1,32], index: 6, kind: input, shape index: {}]
  %s7 = inlined_call_operand.vmem [shape: f32[1,32], index: 7, kind: input, shape index: {}]
  %s8 = inlined_call_operand.vmem [shape: bf16[32,64], index: 8, kind: input, shape index: {}]
  %s9 = inlined_call_operand.vmem [shape: f32[1,64], index: 9, kind: input, shape index: {}]
  %s10 = inlined_call_operand.vmem [shape: bf16[64,32], index: 10, kind: input, shape index: {}]
  %s11 = inlined_call_operand.vmem [shape: f32[1,32], index: 11, kind: input, shape index: {}]
  %s12 = inlined_call_operand.vmem [shape: f32[1,32], index: 12, kind: input, shape index: {}]
  %s13 = inlined_call_operand.vmem [shape: f32[1,32], index: 13, kind: input, shape index: {}]
  %s14 = inlined_call_operand.vmem [shape: f32[2,8,32], index: 14, kind: output, shape index: {}]
  %s15 = sld [smem:[#allocation0]]
  $region89: #{my_model_forward.3} parent=0
    _
  %s17 = ssub.s32 1, %s15
  %s18 = scalar_select 0, %s17, %s15
  loop: start=0, step=1, limit=4
  $region2: #{my_model_forward.3} parent=0 // loop_pre_header
    _
  $region3: #{my_model_forward.3} parent=0 // loop_header
    %s20 = sphi 0, %s24
    %p21 = scmp.ge.s32.totalorder %s20, 4
    %s30 = sphi 0, %s32
    %s33 = sphi 0, %s30
    %s34 = sphi 0, %s33
    %s50 = sphi 0, %s34
    %s56 = sphi 0, %s58
    %s59 = sphi 0, %s56
    %s60 = sphi 0, %s59
    %s76 = sphi 0, %s60
    %s80 = sphi 0, %s80
    %s82 = sphi 0, %s80
    %s83 = sphi 0, %s82
    %s97 = sphi 0, %s83
    %s101 = sphi 0, %s101
    %s103 = sphi 0, %s101
    %s104 = sphi 0, %s103
    %s118 = sphi 0, %s104
    %s122 = sphi 0, %s122
    %s124 = sphi 0, %s122
    %s125 = sphi 0, %s124
    %s139 = sphi 0, %s125
    %s143 = sphi 0, %s143
    %s145 = sphi 0, %s143
    %s146 = sphi 0, %s145
    %s160 = sphi 0, %s146
    %s164 = sphi 0, %s164
    %s166 = sphi 0, %s164
    %s167 = sphi 0, %s166
    %s181 = sphi 0, %s167
    %s185 = sphi 0, %s185
    %s187 = sphi 0, %s185
    %s188 = sphi 0, %s187
    %s202 = sphi 0, %s188
    %s206 = sphi 0, %s206
    %s208 = sphi 0, %s206
    %s209 = sphi 0, %s208
    %s223 = sphi 0, %s209
    %s227 = sphi 0, %s227
    %s229 = sphi 0, %s227
    %s230 = sphi 0, %s229
    %s244 = sphi 0, %s230
    %s248 = sphi 0, %s248
    %s250 = sphi 0, %s248
    %s251 = sphi 0, %s250
    %s265 = sphi 0, %s251
    %s269 = sphi 0, %s269
    %s271 = sphi 0, %s269
    %s272 = sphi 0, %s271
    %s286 = sphi 0, %s272
    %s290 = sphi 0, %s290
    %s292 = sphi 0, %s290
    %s293 = sphi 0, %s292
    %s307 = sphi 0, %s293
    %s311 = sphi 0, %s311
    %s313 = sphi 0, %s311
    %s314 = sphi 0, %s313
    %s328 = sphi 0, %s314
    %s334 = sphi 0, %s336
    %s337 = sphi 0, %s334
    %s338 = sphi 0, %s337
    %s354 = sphi 0, %s338
  $region4: #{my_model_forward.3} parent=0 // loop_header_branch
    %23 = sbr.rel (%p21) target = $region8
  $region5: #{my_model_forward.3} parent=0 // loop_body
    %s25 = ssub.s32 %s20, 1
    %s26 = ssub.s32 %s20, 2
    %s27 = sadd.s32 %s20, 1
    %s28 = ssub.s32 %s20, %s27
    %p29 = scmp.eq.s32.totalorder %s28, 0
    %s31 = sadd.s32 %s30, 1
    %s32 = scalar_select %p29, %s30, %s31
    %p35 = pneg %p29
    %p36 = scmp.eq.s32.totalorder %s20, 1
    %p37 = por %p35, %p36
    %p38 = scmp.ne.s32.totalorder %s30, %s33
    %p39 = scmp.eq.s32.totalorder %s20, 0
    %p40 = por %p38, %p39
    %p41 = scmp.ne.s32.totalorder %s30, %s33
    %p42 = scmp.eq.s32.totalorder %s25, 1
    %p43 = por %p41, %p42
    %p44 = scmp.ne.s32.totalorder %s33, %s34
    %p45 = scmp.eq.s32.totalorder %s25, 0
    %p46 = por %p44, %p45
    %p47 = scmp.ne.s32.totalorder %s33, %s34
    %p48 = scmp.eq.s32.totalorder %s26, 1
    %p49 = por %p47, %p48
    %p51 = scmp.ne.s32.totalorder %s34, %s50
    %p52 = scmp.eq.s32.totalorder %s26, 0
    %p53 = por %p51, %p52
    %s54 = ssub.s32 %s20, %s27
    %p55 = scmp.eq.s32.totalorder %s54, 0
    %s57 = sadd.s32 %s56, 1
    %s58 = scalar_select %p55, %s56, %s57
    %p61 = pneg %p55
    %p62 = scmp.eq.s32.totalorder %s20, 1
    %p63 = por %p61, %p62
    %p64 = scmp.ne.s32.totalorder %s56, %s59
    %p65 = scmp.eq.s32.totalorder %s20, 0
    %p66 = por %p64, %p65
    %p67 = scmp.ne.s32.totalorder %s56, %s59
    %p68 = scmp.eq.s32.totalorder %s25, 1
    %p69 = por %p67, %p68
    %p70 = scmp.ne.s32.totalorder %s59, %s60
    %p71 = scmp.eq.s32.totalorder %s25, 0
    %p72 = por %p70, %p71
    %p73 = scmp.ne.s32.totalorder %s59, %s60
    %p74 = scmp.eq.s32.totalorder %s26, 1
    %p75 = por %p73, %p74
    %p77 = scmp.ne.s32.totalorder %s60, %s76
    %p78 = scmp.eq.s32.totalorder %s26, 0
    %p79 = por %p77, %p78
    %s81 = sadd.s32 %s80, 1
    %p84 = scmp.eq.s32.totalorder %s20, 1
    %p85 = scmp.ne.s32.totalorder %s80, %s82
    %p86 = scmp.eq.s32.totalorder %s20, 0
    %p87 = por %p85, %p86
    %p88 = scmp.ne.s32.totalorder %s80, %s82
    %p89 = scmp.eq.s32.totalorder %s25, 1
    %p90 = por %p88, %p89
    %p91 = scmp.ne.s32.totalorder %s82, %s83
    %p92 = scmp.eq.s32.totalorder %s25, 0
    %p93 = por %p91, %p92
    %p94 = scmp.ne.s32.totalorder %s82, %s83
    %p95 = scmp.eq.s32.totalorder %s26, 1
    %p96 = por %p94, %p95
    %p98 = scmp.ne.s32.totalorder %s83, %s97
    %p99 = scmp.eq.s32.totalorder %s26, 0
    %p100 = por %p98, %p99
    %s102 = sadd.s32 %s101, 1
    %p105 = scmp.eq.s32.totalorder %s20, 1
    %p106 = scmp.ne.s32.totalorder %s101, %s103
    %p107 = scmp.eq.s32.totalorder %s20, 0
    %p108 = por %p106, %p107
    %p109 = scmp.ne.s32.totalorder %s101, %s103
    %p110 = scmp.eq.s32.totalorder %s25, 1
    %p111 = por %p109, %p110
    %p112 = scmp.ne.s32.totalorder %s103, %s104
    %p113 = scmp.eq.s32.totalorder %s25, 0
    %p114 = por %p112, %p113
    %p115 = scmp.ne.s32.totalorder %s103, %s104
    %p116 = scmp.eq.s32.totalorder %s26, 1
    %p117 = por %p115, %p116
    %p119 = scmp.ne.s32.totalorder %s104, %s118
    %p120 = scmp.eq.s32.totalorder %s26, 0
    %p121 = por %p119, %p120
    %s123 = sadd.s32 %s122, 1
    %p126 = scmp.eq.s32.totalorder %s20, 1
    %p127 = scmp.ne.s32.totalorder %s122, %s124
    %p128 = scmp.eq.s32.totalorder %s20, 0
    %p129 = por %p127, %p128
    %p130 = scmp.ne.s32.totalorder %s122, %s124
    %p131 = scmp.eq.s32.totalorder %s25, 1
    %p132 = por %p130, %p131
    %p133 = scmp.ne.s32.totalorder %s124, %s125
    %p134 = scmp.eq.s32.totalorder %s25, 0
    %p135 = por %p133, %p134
    %p136 = scmp.ne.s32.totalorder %s124, %s125
    %p137 = scmp.eq.s32.totalorder %s26, 1
    %p138 = por %p136, %p137
    %p140 = scmp.ne.s32.totalorder %s125, %s139
    %p141 = scmp.eq.s32.totalorder %s26, 0
    %p142 = por %p140, %p141
    %s144 = sadd.s32 %s143, 1
    %p147 = scmp.eq.s32.totalorder %s20, 1
    %p148 = scmp.ne.s32.totalorder %s143, %s145
    %p149 = scmp.eq.s32.totalorder %s20, 0
    %p150 = por %p148, %p149
    %p151 = scmp.ne.s32.totalorder %s143, %s145
    %p152 = scmp.eq.s32.totalorder %s25, 1
    %p153 = por %p151, %p152
    %p154 = scmp.ne.s32.totalorder %s145, %s146
    %p155 = scmp.eq.s32.totalorder %s25, 0
    %p156 = por %p154, %p155
    %p157 = scmp.ne.s32.totalorder %s145, %s146
    %p158 = scmp.eq.s32.totalorder %s26, 1
    %p159 = por %p157, %p158
    %p161 = scmp.ne.s32.totalorder %s146, %s160
    %p162 = scmp.eq.s32.totalorder %s26, 0
    %p163 = por %p161, %p162
    %s165 = sadd.s32 %s164, 1
    %p168 = scmp.eq.s32.totalorder %s20, 1
    %p169 = scmp.ne.s32.totalorder %s164, %s166
    %p170 = scmp.eq.s32.totalorder %s20, 0
    %p171 = por %p169, %p170
    %p172 = scmp.ne.s32.totalorder %s164, %s166
    %p173 = scmp.eq.s32.totalorder %s25, 1
    %p174 = por %p172, %p173
    %p175 = scmp.ne.s32.totalorder %s166, %s167
    %p176 = scmp.eq.s32.totalorder %s25, 0
    %p177 = por %p175, %p176
    %p178 = scmp.ne.s32.totalorder %s166, %s167
    %p179 = scmp.eq.s32.totalorder %s26, 1
    %p180 = por %p178, %p179
    %p182 = scmp.ne.s32.totalorder %s167, %s181
    %p183 = scmp.eq.s32.totalorder %s26, 0
    %p184 = por %p182, %p183
    %s186 = sadd.s32 %s185, 1
    %p189 = scmp.eq.s32.totalorder %s20, 1
    %p190 = scmp.ne.s32.totalorder %s185, %s187
    %p191 = scmp.eq.s32.totalorder %s20, 0
    %p192 = por %p190, %p191
    %p193 = scmp.ne.s32.totalorder %s185, %s187
    %p194 = scmp.eq.s32.totalorder %s25, 1
    %p195 = por %p193, %p194
    %p196 = scmp.ne.s32.totalorder %s187, %s188
    %p197 = scmp.eq.s32.totalorder %s25, 0
    %p198 = por %p196, %p197
    %p199 = scmp.ne.s32.totalorder %s187, %s188
    %p200 = scmp.eq.s32.totalorder %s26, 1
    %p201 = por %p199, %p200
    %p203 = scmp.ne.s32.totalorder %s188, %s202
    %p204 = scmp.eq.s32.totalorder %s26, 0
    %p205 = por %p203, %p204
    %s207 = sadd.s32 %s206, 1
    %p210 = scmp.eq.s32.totalorder %s20, 1
    %p211 = scmp.ne.s32.totalorder %s206, %s208
    %p212 = scmp.eq.s32.totalorder %s20, 0
    %p213 = por %p211, %p212
    %p214 = scmp.ne.s32.totalorder %s206, %s208
    %p215 = scmp.eq.s32.totalorder %s25, 1
    %p216 = por %p214, %p215
    %p217 = scmp.ne.s32.totalorder %s208, %s209
    %p218 = scmp.eq.s32.totalorder %s25, 0
    %p219 = por %p217, %p218
    %p220 = scmp.ne.s32.totalorder %s208, %s209
    %p221 = scmp.eq.s32.totalorder %s26, 1
    %p222 = por %p220, %p221
    %p224 = scmp.ne.s32.totalorder %s209, %s223
    %p225 = scmp.eq.s32.totalorder %s26, 0
    %p226 = por %p224, %p225
    %s228 = sadd.s32 %s227, 1
    %p231 = scmp.eq.s32.totalorder %s20, 1
    %p232 = scmp.ne.s32.totalorder %s227, %s229
    %p233 = scmp.eq.s32.totalorder %s20, 0
    %p234 = por %p232, %p233
    %p235 = scmp.ne.s32.totalorder %s227, %s229
    %p236 = scmp.eq.s32.totalorder %s25, 1
    %p237 = por %p235, %p236
    %p238 = scmp.ne.s32.totalorder %s229, %s230
    %p239 = scmp.eq.s32.totalorder %s25, 0
    %p240 = por %p238, %p239
    %p241 = scmp.ne.s32.totalorder %s229, %s230
    %p242 = scmp.eq.s32.totalorder %s26, 1
    %p243 = por %p241, %p242
    %p245 = scmp.ne.s32.totalorder %s230, %s244
    %p246 = scmp.eq.s32.totalorder %s26, 0
    %p247 = por %p245, %p246
    %s249 = sadd.s32 %s248, 1
    %p252 = scmp.eq.s32.totalorder %s20, 1
    %p253 = scmp.ne.s32.totalorder %s248, %s250
    %p254 = scmp.eq.s32.totalorder %s20, 0
    %p255 = por %p253, %p254
    %p256 = scmp.ne.s32.totalorder %s248, %s250
    %p257 = scmp.eq.s32.totalorder %s25, 1
    %p258 = por %p256, %p257
    %p259 = scmp.ne.s32.totalorder %s250, %s251
    %p260 = scmp.eq.s32.totalorder %s25, 0
    %p261 = por %p259, %p260
    %p262 = scmp.ne.s32.totalorder %s250, %s251
    %p263 = scmp.eq.s32.totalorder %s26, 1
    %p264 = por %p262, %p263
    %p266 = scmp.ne.s32.totalorder %s251, %s265
    %p267 = scmp.eq.s32.totalorder %s26, 0
    %p268 = por %p266, %p267
    %s270 = sadd.s32 %s269, 1
    %p273 = scmp.eq.s32.totalorder %s20, 1
    %p274 = scmp.ne.s32.totalorder %s269, %s271
    %p275 = scmp.eq.s32.totalorder %s20, 0
    %p276 = por %p274, %p275
    %p277 = scmp.ne.s32.totalorder %s269, %s271
    %p278 = scmp.eq.s32.totalorder %s25, 1
    %p279 = por %p277, %p278
    %p280 = scmp.ne.s32.totalorder %s271, %s272
    %p281 = scmp.eq.s32.totalorder %s25, 0
    %p282 = por %p280, %p281
    %p283 = scmp.ne.s32.totalorder %s271, %s272
    %p284 = scmp.eq.s32.totalorder %s26, 1
    %p285 = por %p283, %p284
    %p287 = scmp.ne.s32.totalorder %s272, %s286
    %p288 = scmp.eq.s32.totalorder %s26, 0
    %p289 = por %p287, %p288
    %s291 = sadd.s32 %s290, 1
    %p294 = scmp.eq.s32.totalorder %s20, 1
    %p295 = scmp.ne.s32.totalorder %s290, %s292
    %p296 = scmp.eq.s32.totalorder %s20, 0
    %p297 = por %p295, %p296
    %p298 = scmp.ne.s32.totalorder %s290, %s292
    %p299 = scmp.eq.s32.totalorder %s25, 1
    %p300 = por %p298, %p299
    %p301 = scmp.ne.s32.totalorder %s292, %s293
    %p302 = scmp.eq.s32.totalorder %s25, 0
    %p303 = por %p301, %p302
    %p304 = scmp.ne.s32.totalorder %s292, %s293
    %p305 = scmp.eq.s32.totalorder %s26, 1
    %p306 = por %p304, %p305
    %p308 = scmp.ne.s32.totalorder %s293, %s307
    %p309 = scmp.eq.s32.totalorder %s26, 0
    %p310 = por %p308, %p309
    %s312 = sadd.s32 %s311, 1
    %p315 = scmp.eq.s32.totalorder %s20, 1
    %p316 = scmp.ne.s32.totalorder %s311, %s313
    %p317 = scmp.eq.s32.totalorder %s20, 0
    %p318 = por %p316, %p317
    %p319 = scmp.ne.s32.totalorder %s311, %s313
    %p320 = scmp.eq.s32.totalorder %s25, 1
    %p321 = por %p319, %p320
    %p322 = scmp.ne.s32.totalorder %s313, %s314
    %p323 = scmp.eq.s32.totalorder %s25, 0
    %p324 = por %p322, %p323
    %p325 = scmp.ne.s32.totalorder %s313, %s314
    %p326 = scmp.eq.s32.totalorder %s26, 1
    %p327 = por %p325, %p326
    %p329 = scmp.ne.s32.totalorder %s314, %s328
    %p330 = scmp.eq.s32.totalorder %s26, 0
    %p331 = por %p329, %p330
    %s332 = ssub.s32 %s20, %s27
    %p333 = scmp.eq.s32.totalorder %s332, 0
    %s335 = sadd.s32 %s334, 1
    %s336 = scalar_select %p333, %s334, %s335
    %p339 = pneg %p333
    %p340 = scmp.eq.s32.totalorder %s20, 1
    %p341 = por %p339, %p340
    %p342 = scmp.ne.s32.totalorder %s334, %s337
    %p343 = scmp.eq.s32.totalorder %s20, 0
    %p344 = por %p342, %p343
    %p345 = scmp.ne.s32.totalorder %s334, %s337
    %p346 = scmp.eq.s32.totalorder %s25, 1
    %p347 = por %p345, %p346
    %p348 = scmp.ne.s32.totalorder %s337, %s338
    %p349 = scmp.eq.s32.totalorder %s25, 0
    %p350 = por %p348, %p349
    %p351 = scmp.ne.s32.totalorder %s337, %s338
    %p352 = scmp.eq.s32.totalorder %s26, 1
    %p353 = por %p351, %p352
    %p355 = scmp.ne.s32.totalorder %s338, %s354
    %p356 = scmp.eq.s32.totalorder %s26, 0
    %p357 = por %p355, %p356
    %p358 = scmp.le.s32.totalorder 1, %s20
    %p359 = scmp.lt.s32.totalorder %s20, 3
    %p360 = pnand %p358, %p359
    %p361 = pneg %p360
    // Predicated region
    $region9: #{my_model_forward.3} parent=5 // pred_check
      _
    $region10: #{my_model_forward.3} parent=5 // pred_check_branch
      %363 = sbr.rel (%p360) target = $region12
    $region11: #{my_model_forward.3} parent=5 // pred_region
      %s364 = ssub.s32 %s20, 1
      // Predicated region
      $region13: #{my_model_forward.3} parent=11 // pred_check
        %p365 = pneg %p93
      $region14: #{my_model_forward.3} parent=11 // pred_check_branch
        %367 = sbr.rel (%p365) target = $region16
      $region15: #{my_model_forward.3} parent=11 // pred_region
        _
      $region16: #{my_model_forward.3} parent=11 // pred_fallthru
        _
      // Predicated region
      $region17: #{my_model_forward.3} parent=11 // pred_check
        %p368 = pneg %p114
      $region18: #{my_model_forward.3} parent=11 // pred_check_branch
        %370 = sbr.rel (%p368) target = $region20
      $region19: #{my_model_forward.3} parent=11 // pred_region
        _
      $region20: #{my_model_forward.3} parent=11 // pred_fallthru
        _
      // Predicated region
      $region21: #{my_model_forward.3} parent=11 // pred_check
        %p371 = pneg %p135
      $region22: #{my_model_forward.3} parent=11 // pred_check_branch
        %373 = sbr.rel (%p371) target = $region24
      $region23: #{my_model_forward.3} parent=11 // pred_region
        _
      $region24: #{my_model_forward.3} parent=11 // pred_fallthru
        _
      // Predicated region
      $region25: #{my_model_forward.3} parent=11 // pred_check
        %p374 = pneg %p156
      $region26: #{my_model_forward.3} parent=11 // pred_check_branch
        %376 = sbr.rel (%p374) target = $region28
      $region27: #{my_model_forward.3} parent=11 // pred_region
        _
      $region28: #{my_model_forward.3} parent=11 // pred_fallthru
        _
      // Predicated region
      $region29: #{my_model_forward.3} parent=11 // pred_check
        %p377 = pneg %p177
      $region30: #{my_model_forward.3} parent=11 // pred_check_branch
        %379 = sbr.rel (%p377) target = $region32
      $region31: #{my_model_forward.3} parent=11 // pred_region
        _
      $region32: #{my_model_forward.3} parent=11 // pred_fallthru
        _
      // Predicated region
      $region33: #{my_model_forward.3} parent=11 // pred_check
        %p380 = pneg %p198
      $region34: #{my_model_forward.3} parent=11 // pred_check_branch
        %382 = sbr.rel (%p380) target = $region36
      $region35: #{my_model_forward.3} parent=11 // pred_region
        _
      $region36: #{my_model_forward.3} parent=11 // pred_fallthru
        _
      // Predicated region
      $region37: #{my_model_forward.3} parent=11 // pred_check
        %p383 = pneg %p219
      $region38: #{my_model_forward.3} parent=11 // pred_check_branch
        %385 = sbr.rel (%p383) target = $region40
      $region39: #{my_model_forward.3} parent=11 // pred_region
        _
      $region40: #{my_model_forward.3} parent=11 // pred_fallthru
        _
      // Predicated region
      $region41: #{my_model_forward.3} parent=11 // pred_check
        %p386 = pneg %p240
      $region42: #{my_model_forward.3} parent=11 // pred_check_branch
        %388 = sbr.rel (%p386) target = $region44
      $region43: #{my_model_forward.3} parent=11 // pred_region
        _
      $region44: #{my_model_forward.3} parent=11 // pred_fallthru
        _
      // Predicated region
      $region45: #{my_model_forward.3} parent=11 // pred_check
        %p389 = pneg %p261
      $region46: #{my_model_forward.3} parent=11 // pred_check_branch
        %391 = sbr.rel (%p389) target = $region48
      $region47: #{my_model_forward.3} parent=11 // pred_region
        _
      $region48: #{my_model_forward.3} parent=11 // pred_fallthru
        _
      // Predicated region
      $region49: #{my_model_forward.3} parent=11 // pred_check
        %p392 = pneg %p282
      $region50: #{my_model_forward.3} parent=11 // pred_check_branch
        %394 = sbr.rel (%p392) target = $region52
      $region51: #{my_model_forward.3} parent=11 // pred_region
        _
      $region52: #{my_model_forward.3} parent=11 // pred_fallthru
        _
      // Predicated region
      $region53: #{my_model_forward.3} parent=11 // pred_check
        %p395 = pneg %p303
      $region54: #{my_model_forward.3} parent=11 // pred_check_branch
        %397 = sbr.rel (%p395) target = $region56
      $region55: #{my_model_forward.3} parent=11 // pred_region
        _
      $region56: #{my_model_forward.3} parent=11 // pred_fallthru
        _
      // Predicated region
      $region57: #{my_model_forward.3} parent=11 // pred_check
        %p398 = pneg %p324
      $region58: #{my_model_forward.3} parent=11 // pred_check_branch
        %400 = sbr.rel (%p398) target = $region60
      $region59: #{my_model_forward.3} parent=11 // pred_region
        _
      $region60: #{my_model_forward.3} parent=11 // pred_fallthru
        _
    $region12: #{my_model_forward.3} parent=5 // pred_fallthru
      _
    %p401 = scmp.lt.s32.totalorder %s20, 2
    // Predicated region
    $region61: #{my_model_forward.3} parent=5 // pred_check
      %p402 = pneg %p401
    $region62: #{my_model_forward.3} parent=5 // pred_check_branch
      %404 = sbr.rel (%p402) target = $region64
    $region63: #{my_model_forward.3} parent=5 // pred_region
      // Predicated region
      $region65: #{my_model_forward.3} parent=63 // pred_check
        %p405 = pneg %p40
      $region66: #{my_model_forward.3} parent=63 // pred_check_branch
        %407 = sbr.rel (%p405) target = $region68
      $region67: #{my_model_forward.3} parent=63 // pred_region
        %p408 = scmp.lt.s32.totalorder %s20, 1
        %s409 = scalar_select %p408, %s20, 1
        %s410 = smul.addr %s409, 8
        %s411 = scalar_lea.vmem %s0, %s410
      $region68: #{my_model_forward.3} parent=63 // pred_fallthru
        _
      // Predicated region
      $region69: #{my_model_forward.3} parent=63 // pred_check
        %p412 = pneg %p66
      $region70: #{my_model_forward.3} parent=63 // pred_check_branch
        %414 = sbr.rel (%p412) target = $region72
      $region71: #{my_model_forward.3} parent=63 // pred_region
        %p415 = scmp.lt.s32.totalorder %s20, 1
        %s416 = scalar_select %p415, %s20, 1
        %s417 = scalar_lea.vmem %s1, %s416
      $region72: #{my_model_forward.3} parent=63 // pred_fallthru
        _
    $region64: #{my_model_forward.3} parent=5 // pred_fallthru
      _
    %p418 = scmp.le.s32.totalorder 1, %s20
    %p419 = scmp.lt.s32.totalorder %s20, 3
    %p420 = pnand %p418, %p419
    %p421 = pneg %p420
    // Predicated region
    $region73: #{my_model_forward.3} parent=5 // pred_check
      _
    $region74: #{my_model_forward.3} parent=5 // pred_check_branch
      %423 = sbr.rel (%p420) target = $region76
    $region75: #{my_model_forward.3} parent=5 // pred_region
      %s424 = ssub.s32 %s20, 1
      %p425 = scmp.lt.s32.totalorder %s25, 1
      %s426 = scalar_select %p425, %s25, 1
      %s427 = smul.addr %s426, 8
      %s428 = scalar_lea.vmem %s0, %s427
      %p429 = pneg %p46
      %p430 = pneg %p43
      %p431 = scmp.lt.s32.totalorder %s25, 1
      %s432 = scalar_select %p431, %s25, 1
      %s433 = scalar_lea.vmem %s1, %s432
      %p434 = pneg %p72
      %p435 = pneg %p69
      %p436 = pneg %p93
      %p437 = pneg %p90
      %p438 = pneg %p114
      %p439 = pneg %p111
      %p440 = pneg %p135
      %p441 = pneg %p132
      %p442 = pneg %p156
      %p443 = pneg %p153
      %p444 = pneg %p177
      %p445 = pneg %p174
      %p446 = pneg %p198
      %p447 = pneg %p195
      %p448 = pneg %p219
      %p449 = pneg %p216
      %p450 = pneg %p240
      %p451 = pneg %p237
      %p452 = pneg %p261
      %p453 = pneg %p258
      %p454 = pneg %p282
      %p455 = pneg %p279
      %p456 = pneg %p303
      %p457 = pneg %p300
      %p458 = pneg %p324
      %p459 = pneg %p321
      %p460 = pneg %p350
      %p461 = pneg %p347
      %p462 = scmp.lt.s32.totalorder %s25, 1
      %s463 = scalar_select %p462, %s25, 1
      %s464 = smul.addr %s463, 8
      %s465 = scalar_lea.vmem %s14, %s464
      %p466 = scmp.lt.s32.totalorder %s25, 1
      %s467 = scalar_select %p466, %s25, 1
      %s468 = smul.addr %s467, 8
      %s469 = scalar_lea.vmem %s0, %s468
      %p470 = scmp.lt.s32.totalorder %s25, 1
      %s471 = scalar_select %p470, %s25, 1
      %s472 = scalar_lea.vmem %s1, %s471
      %p473 = scmp.lt.s32.totalorder %s25, 1
      %s474 = scalar_select %p473, %s25, 1
      %s475 = smul.addr %s474, 8
      %s476 = scalar_lea.vmem %s14, %s475
      %v478 = vld [vmem:[%s469] sm:$0xff]
      %v479 = vld [vmem:[%s472] sm:$0x1]
      %v480 = vsub.f32 1.0, %v479
      %v481 = vmul.f32 %v480, -1e+30
      %v482 = vpack.c.bf16 %v478, %v478
      %v483 = vld [vmem:[%s2] sm:$0xf]
      %v484 = vld [vmem:[%s2 + $0x4] sm:$0xf]
      %v485 = vld [vmem:[%s2 + $0x8] sm:$0xf]
      %v486 = vld [vmem:[%s2 + $0xc] sm:$0xf]
      %v491 = vunpack.c.l.b16 %v483
      %v492 = vunpack.c.l.b16 %v484
      %v493 = vunpack.c.l.b16 %v485
      %v494 = vunpack.c.l.b16 %v486
      %v495 = vpack.c.b16 %v492, %v491
      %v496 = vpack.c.b16 %v494, %v493
      %vm499 = vcmask 261120
      %v501 = vsel %vm499, %v482, 0
      %503 = vmatprep.subr.bf16.mxu0 0
      %504 = vmatpush1.bf16.msra.mxu0 0
      %505 = vmatprep.subr.bf16.mxu0 0
      %506 = vmatpush1.bf16.msra.mxu0 0
      %507 = vmatprep.subr.bf16.mxu0 0
      %508 = vmatpush1.bf16.msra.mxu0 0
      %509 = vmatprep.subr.bf16.mxu0 0
      %510 = vmatpush1.bf16.msra.mxu0 0
      %511 = vmatprep.subr.bf16.mxu0 0
      %512 = vmatpush1.bf16.msra.mxu0 0
      %513 = vmatprep.subr.bf16.mxu0 0
      %514 = vmatpush1.bf16.msra.mxu0 0
      %515 = vmatprep.subr.bf16.mxu0 0
      %516 = vmatpush1.bf16.msra.mxu0 %v496
      %517 = vmatprep.subr.bf16.mxu0 0
      %518 = vmatpush1.bf16.msra.mxu0 %v495
      %519 = vmatprep.subr.bf16.mxu0 0
      %520 = vmatpush2.bf16.msra.mxu0 0
      %521 = vmatprep.subr.bf16.mxu0 0
      %522 = vmatpush2.bf16.msra.mxu0 0
      %523 = vmatprep.subr.bf16.mxu0 0
      %524 = vmatpush2.bf16.msra.mxu0 0
      %525 = vmatprep.subr.bf16.mxu0 0
      %526 = vmatpush2.bf16.msra.mxu0 0
      %527 = vmatprep.subr.bf16.mxu0 0
      %528 = vmatpush2.bf16.msra.mxu0 0
      %529 = vmatprep.subr.bf16.mxu0 0
      %530 = vmatpush2.bf16.msra.mxu0 0
      %531 = vmatprep.subr.bf16.mxu0 0
      %532 = vmatpush2.bf16.msra.mxu0 0
      %533 = vmatprep.subr.bf16.mxu0 0
      %534 = vmatpush2.bf16.msra.mxu0 0
      %535 = vmatprep.mubr.bf16.mxu0 0
      %536 = vmatmul.mubr.bf16.gmra.mxu0 %v501
      %v537 = vpop.f32.mrf.mxu0
      %v538 = vadd.f32 0.0, %v537
      %v539 = vpop.f32.mrf.mxu0
      %v540 = vpop.f32.mrf.mxu0
      %v541 = vpop.f32.mrf.mxu0
      %542 = vdwg.mxu0
      %v543 = vld [vmem:[%s3] sm:$0xf]
      %v544 = vld [vmem:[%s3 + $0x4] sm:$0xf]
      %v545 = vld [vmem:[%s3 + $0x8] sm:$0xf]
      %v546 = vld [vmem:[%s3 + $0xc] sm:$0xf]
      %v551 = vunpack.c.l.b16 %v543
      %v552 = vunpack.c.l.b16 %v544
      %v553 = vunpack.c.l.b16 %v545
      %v554 = vunpack.c.l.b16 %v546
      %v555 = vpack.c.b16 %v552, %v551
      %v556 = vpack.c.b16 %v554, %v553
      %559 = vmatprep.subr.bf16.mxu0 0
      %560 = vmatpush1.bf16.msra.mxu0 0
      %561 = vmatprep.subr.bf16.mxu0 0
      %562 = vmatpush1.bf16.msra.mxu0 0
      %563 = vmatprep.subr.bf16.mxu0 0
      %564 = vmatpush1.bf16.msra.mxu0 0
      %565 = vmatprep.subr.bf16.mxu0 0
      %566 = vmatpush1.bf16.msra.mxu0 0
      %567 = vmatprep.subr.bf16.mxu0 0
      %568 = vmatpush1.bf16.msra.mxu0 0
      %569 = vmatprep.subr.bf16.mxu0 0
      %570 = vmatpush1.bf16.msra.mxu0 0
      %571 = vmatprep.subr.bf16.mxu0 0
      %572 = vmatpush1.bf16.msra.mxu0 %v556
      %573 = vmatprep.subr.bf16.mxu0 0
      %574 = vmatpush1.bf16.msra.mxu0 %v555
      %575 = vmatprep.subr.bf16.mxu0 0
      %576 = vmatpush2.bf16.msra.mxu0 0
      %577 = vmatprep.subr.bf16.mxu0 0
      %578 = vmatpush2.bf16.msra.mxu0 0
      %579 = vmatprep.subr.bf16.mxu0 0
      %580 = vmatpush2.bf16.msra.mxu0 0
      %581 = vmatprep.subr.bf16.mxu0 0
      %582 = vmatpush2.bf16.msra.mxu0 0
      %583 = vmatprep.subr.bf16.mxu0 0
      %584 = vmatpush2.bf16.msra.mxu0 0
      %585 = vmatprep.subr.bf16.mxu0 0
      %586 = vmatpush2.bf16.msra.mxu0 0
      %587 = vmatprep.subr.bf16.mxu0 0
      %588 = vmatpush2.bf16.msra.mxu0 0
      %589 = vmatprep.subr.bf16.mxu0 0
      %590 = vmatpush2.bf16.msra.mxu0 0
      %591 = vmatprep.mubr.bf16.mxu0 0
      %592 = vmatmul.mubr.bf16.gmra.mxu0 %v501
      %v593 = vpop.f32.mrf.mxu0
      %v594 = vadd.f32 0.0, %v593
      %v595 = vpop.f32.mrf.mxu0
      %v596 = vpop.f32.mrf.mxu0
      %v597 = vpop.f32.mrf.mxu0
      %598 = vdwg.mxu0
      %v599 = vld [vmem:[%s4] sm:$0xf]
      %v600 = vld [vmem:[%s4 + $0x4] sm:$0xf]
      %v601 = vld [vmem:[%s4 + $0x8] sm:$0xf]
      %v602 = vld [vmem:[%s4 + $0xc] sm:$0xf]
      %v607 = vunpack.c.l.b16 %v599
      %v608 = vunpack.c.l.b16 %v600
      %v609 = vunpack.c.l.b16 %v601
      %v610 = vunpack.c.l.b16 %v602
      %v611 = vpack.c.b16 %v608, %v607
      %v612 = vpack.c.b16 %v610, %v609
      %615 = vmatprep.subr.bf16.mxu0 0
      %616 = vmatpush1.bf16.msra.mxu0 0
      %617 = vmatprep.subr.bf16.mxu0 0
      %618 = vmatpush1.bf16.msra.mxu0 0
      %619 = vmatprep.subr.bf16.mxu0 0
      %620 = vmatpush1.bf16.msra.mxu0 0
      %621 = vmatprep.subr.bf16.mxu0 0
      %622 = vmatpush1.bf16.msra.mxu0 0
      %623 = vmatprep.subr.bf16.mxu0 0
      %624 = vmatpush1.bf16.msra.mxu0 0
      %625 = vmatprep.subr.bf16.mxu0 0
      %626 = vmatpush1.bf16.msra.mxu0 0
      %627 = vmatprep.subr.bf16.mxu0 0
      %628 = vmatpush1.bf16.msra.mxu0 %v612
      %629 = vmatprep.subr.bf16.mxu0 0
      %630 = vmatpush1.bf16.msra.mxu0 %v611
      %631 = vmatprep.subr.bf16.mxu0 0
      %632 = vmatpush2.bf16.msra.mxu0 0
      %633 = vmatprep.subr.bf16.mxu0 0
      %634 = vmatpush2.bf16.msra.mxu0 0
      %635 = vmatprep.subr.bf16.mxu0 0
      %636 = vmatpush2.bf16.msra.mxu0 0
      %637 = vmatprep.subr.bf16.mxu0 0
      %638 = vmatpush2.bf16.msra.mxu0 0
      %639 = vmatprep.subr.bf16.mxu0 0
      %640 = vmatpush2.bf16.msra.mxu0 0
      %641 = vmatprep.subr.bf16.mxu0 0
      %642 = vmatpush2.bf16.msra.mxu0 0
      %643 = vmatprep.subr.bf16.mxu0 0
      %644 = vmatpush2.bf16.msra.mxu0 0
      %645 = vmatprep.subr.bf16.mxu0 0
      %646 = vmatpush2.bf16.msra.mxu0 0
      %647 = vmatprep.mubr.bf16.mxu0 0
      %648 = vmatmul.mubr.bf16.gmra.mxu0 %v501
      %v649 = vpop.f32.mrf.mxu0
      %v650 = vadd.f32 0.0, %v649
      %v651 = vpop.f32.mrf.mxu0
      %v652 = vpop.f32.mrf.mxu0
      %v653 = vpop.f32.mrf.mxu0
      %654 = vdwg.mxu0
      %v655 = vpack.c.bf16 %v538, %v538
      %v656 = vpack.c.bf16 %v594, %v594
      %v658 = vsel %vm499, %v655, 0
      %v661 = vsel %vm499, %v656, 0
      %663 = vmatprep.subr.bf16.mxu0 0
      %664 = vmatpush1.bf16.xpose.msra.mxu0 0
      %665 = vmatprep.subr.bf16.mxu0 0
      %666 = vmatpush1.bf16.xpose.msra.mxu0 0
      %667 = vmatprep.subr.bf16.mxu0 0
      %668 = vmatpush1.bf16.xpose.msra.mxu0 0
      %669 = vmatprep.subr.bf16.mxu0 0
      %670 = vmatpush1.bf16.xpose.msra.mxu0 0
      %671 = vmatprep.subr.bf16.mxu0 0
      %672 = vmatpush1.bf16.xpose.msra.mxu0 0
      %673 = vmatprep.subr.bf16.mxu0 0
      %674 = vmatpush1.bf16.xpose.msra.mxu0 0
      %675 = vmatprep.subr.bf16.mxu0 0
      %676 = vmatpush1.bf16.xpose.msra.mxu0 0
      %677 = vmatprep.subr.bf16.mxu0 0
      %678 = vmatpush1.bf16.xpose.msra.mxu0 %v661
      %679 = vmatprep.subr.bf16.mxu0 0
      %680 = vmatpush2.bf16.xpose.msra.mxu0 0
      %681 = vmatprep.subr.bf16.mxu0 0
      %682 = vmatpush2.bf16.xpose.msra.mxu0 0
      %683 = vmatprep.subr.bf16.mxu0 0
      %684 = vmatpush2.bf16.xpose.msra.mxu0 0
      %685 = vmatprep.subr.bf16.mxu0 0
      %686 = vmatpush2.bf16.xpose.msra.mxu0 0
      %687 = vmatprep.subr.bf16.mxu0 0
      %688 = vmatpush2.bf16.xpose.msra.mxu0 0
      %689 = vmatprep.subr.bf16.mxu0 0
      %690 = vmatpush2.bf16.xpose.msra.mxu0 0
      %691 = vmatprep.subr.bf16.mxu0 0
      %692 = vmatpush2.bf16.xpose.msra.mxu0 0
      %693 = vmatprep.subr.bf16.mxu0 0
      %694 = vmatpush2.bf16.xpose.msra.mxu0 0
      %695 = vmatprep.mubr.bf16.mxu0 0
      %696 = vmatmul.mubr.bf16.gmra.mxu0 %v658
      %v697 = vpop.f32.mrf.mxu0
      %v698 = vadd.f32 0.0, %v697
      %v699 = vpop.f32.mrf.mxu0
      %v700 = vpop.f32.mrf.mxu0
      %v701 = vpop.f32.mrf.mxu0
      %702 = vdwg.mxu0
      %v703 = vmul.f32 %v698, 0.17677669
      %v705 = vlaneseq
      %v706 = vshrl.u32 %v705, 7
      %v707 = vsub.s32 0, %v706
      %v708 = vrot.slane %v481, %v707
      %v710 = vadd.f32 %v703, %v708
      %vm711 = vcmask 64512
      %v712 = vsel %vm711, %v710, -inf
      %713 = vmax.xlane.f32.xlu0 %v712
      %v714 = vpop.xlane.xlu0 %713
      %v715 = vsub.f32 %v710, %v714
      %v716 = vmul.f32 %v715, 1.442695
      %v717 = vpow.pop %v716
      %v718 = vsel %vm711, %v717, 0.0
      %719 = vadd.xlane.f32.xlu0 %v718
      %v720 = vpop.xlane.xlu0 %719
      %v721 = vrcp.pop %v720
      %v722 = vmul.f32 %v717, %v721
      %v723 = vpack.c.bf16 %v722, %v722
      %v724 = vpack.c.bf16 %v650, %v650
      %v726 = vsel %vm711, %v723, 0
      %vm728 = vcmask 1043456
      %v730 = vsel %vm728, %v724, 0
      %732 = vmatprep.subr.bf16.mxu0 0
      %733 = vmatpush1.bf16.msra.mxu0 0
      %734 = vmatprep.subr.bf16.mxu0 0
      %735 = vmatpush1.bf16.msra.mxu0 0
      %736 = vmatprep.subr.bf16.mxu0 0
      %737 = vmatpush1.bf16.msra.mxu0 0
      %738 = vmatprep.subr.bf16.mxu0 0
      %739 = vmatpush1.bf16.msra.mxu0 0
      %740 = vmatprep.subr.bf16.mxu0 0
      %741 = vmatpush1.bf16.msra.mxu0 0
      %742 = vmatprep.subr.bf16.mxu0 0
      %743 = vmatpush1.bf16.msra.mxu0 0
      %744 = vmatprep.subr.bf16.mxu0 0
      %745 = vmatpush1.bf16.msra.mxu0 0
      %746 = vmatprep.subr.bf16.mxu0 0
      %747 = vmatpush1.bf16.msra.mxu0 %v730
      %748 = vmatprep.subr.bf16.mxu0 0
      %749 = vmatpush2.bf16.msra.mxu0 0
      %750 = vmatprep.subr.bf16.mxu0 0
      %751 = vmatpush2.bf16.msra.mxu0 0
      %752 = vmatprep.subr.bf16.mxu0 0
      %753 = vmatpush2.bf16.msra.mxu0 0
      %754 = vmatprep.subr.bf16.mxu0 0
      %755 = vmatpush2.bf16.msra.mxu0 0
      %756 = vmatprep.subr.bf16.mxu0 0
      %757 = vmatpush2.bf16.msra.mxu0 0
      %758 = vmatprep.subr.bf16.mxu0 0
      %759 = vmatpush2.bf16.msra.mxu0 0
      %760 = vmatprep.subr.bf16.mxu0 0
      %761 = vmatpush2.bf16.msra.mxu0 0
      %762 = vmatprep.subr.bf16.mxu0 0
      %763 = vmatpush2.bf16.msra.mxu0 0
      %764 = vmatprep.mubr.bf16.mxu0 0
      %765 = vmatmul.mubr.bf16.gmra.mxu0 %v726
      %v766 = vpop.f32.mrf.mxu0
      %v767 = vadd.f32 0.0, %v766
      %v768 = vpop.f32.mrf.mxu0
      %v769 = vpop.f32.mrf.mxu0
      %v770 = vpop.f32.mrf.mxu0
      %771 = vdwg.mxu0
      %v772 = vpack.c.bf16 %v767, %v767
      %v773 = vld [vmem:[%s5] sm:$0xf]
      %v774 = vld [vmem:[%s5 + $0x4] sm:$0xf]
      %v775 = vld [vmem:[%s5 + $0x8] sm:$0xf]
      %v776 = vld [vmem:[%s5 + $0xc] sm:$0xf]
      %v781 = vunpack.c.l.b16 %v773
      %v782 = vunpack.c.l.b16 %v774
      %v783 = vunpack.c.l.b16 %v775
      %v784 = vunpack.c.l.b16 %v776
      %v785 = vpack.c.b16 %v782, %v781
      %v786 = vpack.c.b16 %v784, %v783
      %v790 = vsel %vm499, %v772, 0
      %792 = vmatprep.subr.bf16.mxu0 0
      %793 = vmatpush1.bf16.msra.mxu0 0
      %794 = vmatprep.subr.bf16.mxu0 0
      %795 = vmatpush1.bf16.msra.mxu0 0
      %796 = vmatprep.subr.bf16.mxu0 0
      %797 = vmatpush1.bf16.msra.mxu0 0
      %798 = vmatprep.subr.bf16.mxu0 0
      %799 = vmatpush1.bf16.msra.mxu0 0
      %800 = vmatprep.subr.bf16.mxu0 0
      %801 = vmatpush1.bf16.msra.mxu0 0
      %802 = vmatprep.subr.bf16.mxu0 0
      %803 = vmatpush1.bf16.msra.mxu0 0
      %804 = vmatprep.subr.bf16.mxu0 0
      %805 = vmatpush1.bf16.msra.mxu0 %v786
      %806 = vmatprep.subr.bf16.mxu0 0
      %807 = vmatpush1.bf16.msra.mxu0 %v785
      %808 = vmatprep.subr.bf16.mxu0 0
      %809 = vmatpush2.bf16.msra.mxu0 0
      %810 = vmatprep.subr.bf16.mxu0 0
      %811 = vmatpush2.bf16.msra.mxu0 0
      %812 = vmatprep.subr.bf16.mxu0 0
      %813 = vmatpush2.bf16.msra.mxu0 0
      %814 = vmatprep.subr.bf16.mxu0 0
      %815 = vmatpush2.bf16.msra.mxu0 0
      %816 = vmatprep.subr.bf16.mxu0 0
      %817 = vmatpush2.bf16.msra.mxu0 0
      %818 = vmatprep.subr.bf16.mxu0 0
      %819 = vmatpush2.bf16.msra.mxu0 0
      %820 = vmatprep.subr.bf16.mxu0 0
      %821 = vmatpush2.bf16.msra.mxu0 0
      %822 = vmatprep.subr.bf16.mxu0 0
      %823 = vmatpush2.bf16.msra.mxu0 0
      %824 = vmatprep.mubr.bf16.mxu0 0
      %825 = vmatmul.mubr.bf16.gmra.mxu0 %v790
      %v826 = vpop.f32.mrf.mxu0
      %v827 = vadd.f32 0.0, %v826
      %v828 = vpop.f32.mrf.mxu0
      %v829 = vpop.f32.mrf.mxu0
      %v830 = vpop.f32.mrf.mxu0
      %831 = vdwg.mxu0
      %v832 = vadd.f32 %v478, %v827
      %v833 = vld [vmem:[%s6] sm:$0x1]
      %v834 = vld [vmem:[%s7] sm:$0x1]
      %v835 = vsel %vm499, %v832, 0.0
      %836 = vadd.xlane.f32.xlu0 %v835
      %v837 = vpop.xlane.xlu0 %836
      %v838 = vrcp.pop 32.0
      %v839 = vmul.f32 %v837, %v838
      %v840 = vsub.f32 %v832, %v839
      %v841 = vmul.f32 %v840, %v840
      %v842 = vsel %vm499, %v841, 0.0
      %843 = vadd.xlane.f32.xlu0 %v842
      %v844 = vpop.xlane.xlu0 %843
      %v845 = vmul.f32 %v844, %v838
      %v846 = vadd.f32 %v845, 1e-12
      %v847 = vrsqrt.pop %v846
      %v848 = vmul.f32 %v840, %v847
      %v850 = vlaneseq
      %v851 = vshrl.u32 %v850, 7
      %v852 = vsub.s32 0, %v851
      %v853 = vrot.slane %v833, %v852
      %v855 = vmul.f32 %v848, %v853
      %v857 = vlaneseq
      %v858 = vshrl.u32 %v857, 7
      %v859 = vsub.s32 0, %v858
      %v860 = vrot.slane %v834, %v859
      %v862 = vadd.f32 %v855, %v860
      %v863 = vpack.c.bf16 %v862, %v862
      %v864 = vld [vmem:[%s8] sm:$0xf]
      %v865 = vld [vmem:[%s8 + $0x4] sm:$0xf]
      %v866 = vld [vmem:[%s8 + $0x8] sm:$0xf]
      %v867 = vld [vmem:[%s8 + $0xc] sm:$0xf]
      %v868 = vld [vmem:[%s9] sm:$0x1]
      %v870 = vlaneseq
      %v871 = vshrl.u32 %v870, 7
      %v872 = vsub.s32 0, %v871
      %v873 = vrot.slane %v868, %v872
      %v879 = vunpack.c.l.b16 %v864
      %v880 = vunpack.c.l.b16 %v865
      %v881 = vunpack.c.l.b16 %v866
      %v882 = vunpack.c.l.b16 %v867
      %v883 = vpack.c.b16 %v880, %v879
      %v884 = vpack.c.b16 %v882, %v881
      %v888 = vsel %vm499, %v863, 0
      %890 = vmatprep.subr.bf16.mxu0 0
      %891 = vmatpush1.bf16.msra.mxu0 0
      %892 = vmatprep.subr.bf16.mxu0 0
      %893 = vmatpush1.bf16.msra.mxu0 0
      %894 = vmatprep.subr.bf16.mxu0 0
      %895 = vmatpush1.bf16.msra.mxu0 0
      %896 = vmatprep.subr.bf16.mxu0 0
      %897 = vmatpush1.bf16.msra.mxu0 0
      %898 = vmatprep.subr.bf16.mxu0 0
      %899 = vmatpush1.bf16.msra.mxu0 0
      %900 = vmatprep.subr.bf16.mxu0 0
      %901 = vmatpush1.bf16.msra.mxu0 0
      %902 = vmatprep.subr.bf16.mxu0 0
      %903 = vmatpush1.bf16.msra.mxu0 %v884
      %904 = vmatprep.subr.bf16.mxu0 0
      %905 = vmatpush1.bf16.msra.mxu0 %v883
      %906 = vmatprep.subr.bf16.mxu0 0
      %907 = vmatpush2.bf16.msra.mxu0 0
      %908 = vmatprep.subr.bf16.mxu0 0
      %909 = vmatpush2.bf16.msra.mxu0 0
      %910 = vmatprep.subr.bf16.mxu0 0
      %911 = vmatpush2.bf16.msra.mxu0 0
      %912 = vmatprep.subr.bf16.mxu0 0
      %913 = vmatpush2.bf16.msra.mxu0 0
      %914 = vmatprep.subr.bf16.mxu0 0
      %915 = vmatpush2.bf16.msra.mxu0 0
      %916 = vmatprep.subr.bf16.mxu0 0
      %917 = vmatpush2.bf16.msra.mxu0 0
      %918 = vmatprep.subr.bf16.mxu0 0
      %919 = vmatpush2.bf16.msra.mxu0 0
      %920 = vmatprep.subr.bf16.mxu0 0
      %921 = vmatpush2.bf16.msra.mxu0 0
      %922 = vmatprep.mubr.bf16.mxu0 0
      %923 = vmatmul.mubr.bf16.gmra.mxu0 %v888
      %v924 = vpop.f32.mrf.mxu0
      %v925 = vadd.f32 %v873, %v924
      %v926 = vpop.f32.mrf.mxu0
      %v927 = vpop.f32.mrf.mxu0
      %v928 = vpop.f32.mrf.mxu0
      %929 = vdwg.mxu0
      %v930 = vmul.f32 %v925, %v925
      %v931 = vmul.f32 %v925, %v930
      %v932 = vmul.f32 %v931, 0.044715
      %v933 = vadd.f32 %v925, %v932
      %v934 = vmul.f32 %v933, 0.7978846
      %v935 = vtanh.pop %v934
      %v936 = vadd.f32 %v935, 1.0
      %v937 = vmul.f32 %v936, 0.5
      %v938 = vmul.f32 %v925, %v937
      %v939 = vpack.c.bf16 %v938, %v938
      %v940 = vld [vmem:[%s10] sm:$0xf]
      %v941 = vld [vmem:[%s10 + $0x4] sm:$0xf]
      %v942 = vld [vmem:[%s10 + $0x8] sm:$0xf]
      %v943 = vld [vmem:[%s10 + $0xc] sm:$0xf]
      %v944 = vld [vmem:[%s10 + $0x10] sm:$0xf]
      %v945 = vld [vmem:[%s10 + $0x14] sm:$0xf]
      %v946 = vld [vmem:[%s10 + $0x18] sm:$0xf]
      %v947 = vld [vmem:[%s10 + $0x1c] sm:$0xf]
      %v948 = vld [vmem:[%s11] sm:$0x1]
      %v950 = vlaneseq
      %v951 = vshrl.u32 %v950, 7
      %v952 = vsub.s32 0, %v951
      %v953 = vrot.slane %v948, %v952
      %v963 = vunpack.c.l.b16 %v940
      %v964 = vunpack.c.l.b16 %v941
      %v965 = vunpack.c.l.b16 %v942
      %v966 = vunpack.c.l.b16 %v943
      %v967 = vunpack.c.l.b16 %v944
      %v968 = vunpack.c.l.b16 %v945
      %v969 = vunpack.c.l.b16 %v946
      %v970 = vunpack.c.l.b16 %v947
      %v971 = vpack.c.b16 %v964, %v963
      %v972 = vpack.c.b16 %v966, %v965
      %v973 = vpack.c.b16 %v968, %v967
      %v974 = vpack.c.b16 %v970, %v969
      %vm979 = vcmask 523264
      %v981 = vsel %vm979, %v939, 0
      %983 = vmatprep.subr.bf16.mxu0 0
      %984 = vmatpush1.bf16.msra.mxu0 0
      %985 = vmatprep.subr.bf16.mxu0 0
      %986 = vmatpush1.bf16.msra.mxu0 0
      %987 = vmatprep.subr.bf16.mxu0 0
      %988 = vmatpush1.bf16.msra.mxu0 0
      %989 = vmatprep.subr.bf16.mxu0 0
      %990 = vmatpush1.bf16.msra.mxu0 0
      %991 = vmatprep.subr.bf16.mxu0 0
      %992 = vmatpush1.bf16.msra.mxu0 %v974
      %993 = vmatprep.subr.bf16.mxu0 0
      %994 = vmatpush1.bf16.msra.mxu0 %v973
      %995 = vmatprep.subr.bf16.mxu0 0
      %996 = vmatpush1.bf16.msra.mxu0 %v972
      %997 = vmatprep.subr.bf16.mxu0 0
      %998 = vmatpush1.bf16.msra.mxu0 %v971
      %999 = vmatprep.subr.bf16.mxu0 0
      %1000 = vmatpush2.bf16.msra.mxu0 0
      %1001 = vmatprep.subr.bf16.mxu0 0
      %1002 = vmatpush2.bf16.msra.mxu0 0
      %1003 = vmatprep.subr.bf16.mxu0 0
      %1004 = vmatpush2.bf16.msra.mxu0 0
      %1005 = vmatprep.subr.bf16.mxu0 0
      %1006 = vmatpush2.bf16.msra.mxu0 0
      %1007 = vmatprep.subr.bf16.mxu0 0
      %1008 = vmatpush2.bf16.msra.mxu0 0
      %1009 = vmatprep.subr.bf16.mxu0 0
      %1010 = vmatpush2.bf16.msra.mxu0 0
      %1011 = vmatprep.subr.bf16.mxu0 0
      %1012 = vmatpush2.bf16.msra.mxu0 0
      %1013 = vmatprep.subr.bf16.mxu0 0
      %1014 = vmatpush2.bf16.msra.mxu0 0
      %1015 = vmatprep.mubr.bf16.mxu0 0
      %1016 = vmatmul.mubr.bf16.gmra.mxu0 %v981
      %v1017 = vpop.f32.mrf.mxu0
      %v1018 = vadd.f32 %v953, %v1017
      %v1019 = vpop.f32.mrf.mxu0
      %v1020 = vpop.f32.mrf.mxu0
      %v1021 = vpop.f32.mrf.mxu0
      %1022 = vdwg.mxu0
      %v1023 = vadd.f32 %v862, %v1018
      %v1024 = vld [vmem:[%s12] sm:$0x1]
      %v1025 = vld [vmem:[%s13] sm:$0x1]
      %v1026 = vsel %vm499, %v1023, 0.0
      %1027 = vadd.xlane.f32.xlu0 %v1026
      %v1028 = vpop.xlane.xlu0 %1027
      %v1029 = vmul.f32 %v1028, %v838
      %v1030 = vsub.f32 %v1023, %v1029
      %v1031 = vmul.f32 %v1030, %v1030
      %v1032 = vsel %vm499, %v1031, 0.0
      %1033 = vadd.xlane.f32.xlu0 %v1032
      %v1034 = vpop.xlane.xlu0 %1033
      %v1035 = vmul.f32 %v1034, %v838
      %v1036 = vadd.f32 %v1035, 1e-12
      %v1037 = vrsqrt.pop %v1036
      %v1038 = vmul.f32 %v1030, %v1037
      %v1040 = vlaneseq
      %v1041 = vshrl.u32 %v1040, 7
      %v1042 = vsub.s32 0, %v1041
      %v1043 = vrot.slane %v1024, %v1042
      %v1045 = vmul.f32 %v1038, %v1043
      %v1047 = vlaneseq
      %v1048 = vshrl.u32 %v1047, 7
      %v1049 = vsub.s32 0, %v1048
      %v1050 = vrot.slane %v1025, %v1049
      %v1052 = vadd.f32 %v1045, %v1050
      %1053 = vst.msk [vmem:[%s476] sm:$0xff] %vm499, %v1052
      %p1054 = scmp.lt.s32.totalorder %s25, 1
      %s1055 = scalar_select %p1054, %s25, 1
      %s1056 = smul.addr %s1055, 8
      %s1057 = scalar_lea.vmem %s14, %s1056
      // Predicated region
      $region77: #{my_model_forward.3} parent=75 // pred_check
        %p1058 = pneg %p347
      $region78: #{my_model_forward.3} parent=75 // pred_check_branch
        %1060 = sbr.rel (%p1058) target = $region80
      $region79: #{my_model_forward.3} parent=75 // pred_region
        _
      $region80: #{my_model_forward.3} parent=75 // pred_fallthru
        _
    $region76: #{my_model_forward.3} parent=5 // pred_fallthru
      _
    %p1061 = scmp.le.s32.totalorder 2, %s20
    // Predicated region
    $region81: #{my_model_forward.3} parent=5 // pred_check
      %p1062 = pneg %p1061
    $region82: #{my_model_forward.3} parent=5 // pred_check_branch
      %1064 = sbr.rel (%p1062) target = $region84
    $region83: #{my_model_forward.3} parent=5 // pred_region
      %s1065 = ssub.s32 %s20, 2
      // Predicated region
      $region85: #{my_model_forward.3} parent=83 // pred_check
        %p1066 = pneg %p353
      $region86: #{my_model_forward.3} parent=83 // pred_check_branch
        %1068 = sbr.rel (%p1066) target = $region88
      $region87: #{my_model_forward.3} parent=83 // pred_region
        %p1069 = scmp.lt.s32.totalorder %s26, 1
        %s1070 = scalar_select %p1069, %s26, 1
        %s1071 = smul.addr %s1070, 8
        %s1072 = scalar_lea.vmem %s14, %s1071
      $region88: #{my_model_forward.3} parent=83 // pred_fallthru
        _
    $region84: #{my_model_forward.3} parent=5 // pred_fallthru
      _
  $region6: #{my_model_forward.3} parent=0 // loop_footer
    %s24 = sadd.s32 1, %s20
  $region7: #{my_model_forward.3} parent=0 // loop_footer_branch
    %19 = sbr.rel target = $region3
  $region8: #{my_model_forward.3} parent=0 // loop_exit
    _

// kernel: my_model_forward.4
$region0: #{my_model_forward.4}
  #allocation0 [shape = 'u32[]', space=smem, size = 0x4, offset = 0x4, fixed_abs, tag = 'smem constant byte address 0x4 - core index']
  #allocation1 [shape = 'u32[144,128]{1,0:T(1,128)}', space=vmem, size = 0x12000, scoped, tag = 'internal scratch']
  #allocation2 [shape = 'f32[2,32]{1,0:T(2,128)}', space=vmem, size = 0x400, scoped, tag = 'scratch operand']
  %s0 = inlined_call_operand.vmem [shape: f32[2,8,32], index: 0, kind: input, shape index: {}]
  %s1 = inlined_call_operand.vmem [shape: f32[2,8], index: 1, kind: input, shape index: {}]
  %s2 = inlined_call_operand.vmem [shape: f32[8,2,32], index: 2, kind: input, shape index: {}]
  %s3 = inlined_call_operand.vmem [shape: bf16[32,96], index: 3, kind: input, shape index: {}]
  %s4 = inlined_call_operand.vmem [shape: bf16[32,96], index: 4, kind: input, shape index: {}]
  %s5 = inlined_call_operand.vmem [shape: bf16[32,64], index: 5, kind: input, shape index: {}]
  %s6 = inlined_call_operand.vmem [shape: bf16[32,32], index: 6, kind: input, shape index: {}]
  %s7 = inlined_call_operand.vmem [shape: f32[1,96], index: 7, kind: input, shape index: {}]
  %s8 = inlined_call_operand.vmem [shape: f32[1,32], index: 8, kind: input, shape index: {}]
  %s9 = inlined_call_operand.vmem [shape: f32[8,2,32], index: 9, kind: output, shape index: {}]
  %s10 = sld [smem:[#allocation0]]
  $region53: #{my_model_forward.4} parent=0
    _
  %s12 = ssub.s32 1, %s10
  %s13 = scalar_select 0, %s12, %s10
  // Predicated region
  $region2: #{my_model_forward.4} parent=0 // pred_check
    _
  $region3: #{my_model_forward.4} parent=0 // pred_check_branch
    %15 = sbr.rel (0) target = $region5
  $region4: #{my_model_forward.4} parent=0 // pred_region
    _
  $region5: #{my_model_forward.4} parent=0 // pred_fallthru
    _
  // Predicated region
  $region6: #{my_model_forward.4} parent=0 // pred_check
    _
  $region7: #{my_model_forward.4} parent=0 // pred_check_branch
    %17 = sbr.rel (0) target = $region9
  $region8: #{my_model_forward.4} parent=0 // pred_region
    _
  $region9: #{my_model_forward.4} parent=0 // pred_fallthru
    _
  // Predicated region
  $region10: #{my_model_forward.4} parent=0 // pred_check
    _
  $region11: #{my_model_forward.4} parent=0 // pred_check_branch
    %19 = sbr.rel (0) target = $region13
  $region12: #{my_model_forward.4} parent=0 // pred_region
    _
  $region13: #{my_model_forward.4} parent=0 // pred_fallthru
    _
  // Predicated region
  $region14: #{my_model_forward.4} parent=0 // pred_check
    _
  $region15: #{my_model_forward.4} parent=0 // pred_check_branch
    %21 = sbr.rel (0) target = $region17
  $region16: #{my_model_forward.4} parent=0 // pred_region
    _
  $region17: #{my_model_forward.4} parent=0 // pred_fallthru
    _
  // Predicated region
  $region18: #{my_model_forward.4} parent=0 // pred_check
    _
  $region19: #{my_model_forward.4} parent=0 // pred_check_branch
    %23 = sbr.rel (0) target = $region21
  $region20: #{my_model_forward.4} parent=0 // pred_region
    _
  $region21: #{my_model_forward.4} parent=0 // pred_fallthru
    _
  // Predicated region
  $region22: #{my_model_forward.4} parent=0 // pred_check
    _
  $region23: #{my_model_forward.4} parent=0 // pred_check_branch
    %25 = sbr.rel (0) target = $region25
  $region24: #{my_model_forward.4} parent=0 // pred_region
    _
  $region25: #{my_model_forward.4} parent=0 // pred_fallthru
    _
  // Predicated region
  $region26: #{my_model_forward.4} parent=0 // pred_check
    _
  $region27: #{my_model_forward.4} parent=0 // pred_check_branch
    %27 = sbr.rel (0) target = $region29
  $region28: #{my_model_forward.4} parent=0 // pred_region
    _
  $region29: #{my_model_forward.4} parent=0 // pred_fallthru
    _
  // Predicated region
  $region30: #{my_model_forward.4} parent=0 // pred_check
    _
  $region31: #{my_model_forward.4} parent=0 // pred_check_branch
    %29 = sbr.rel (0) target = $region33
  $region32: #{my_model_forward.4} parent=0 // pred_region
    _
  $region33: #{my_model_forward.4} parent=0 // pred_fallthru
    _
  // Predicated region
  $region34: #{my_model_forward.4} parent=0 // pred_check
    _
  $region35: #{my_model_forward.4} parent=0 // pred_check_branch
    %31 = sbr.rel (0) target = $region37
  $region36: #{my_model_forward.4} parent=0 // pred_region
    _
  $region37: #{my_model_forward.4} parent=0 // pred_fallthru
    _
  %v33 = vld [vmem:[%s0] sm:$0xff]
  %v34 = vld [vmem:[%s0 + $0x8] sm:$0xff]
  %v35 = vpack.c.bf16 %v33, %v33
  %v36 = vpack.c.bf16 %v34, %v34
  %v37 = vld [vmem:[%s1] sm:$0x3]
  %v38 = vsub.f32 1.0, %v37
  %v39 = vmul.f32 %v38, -1e+30
  %v40 = vld [vmem:[%s3] sm:$0xf]
  %v41 = vld [vmem:[%s3 + $0x4] sm:$0xf]
  %v42 = vld [vmem:[%s3 + $0x8] sm:$0xf]
  %v43 = vld [vmem:[%s3 + $0xc] sm:$0xf]
  %v44 = vld [vmem:[%s4] sm:$0xf]
  %v45 = vld [vmem:[%s4 + $0x4] sm:$0xf]
  %v46 = vld [vmem:[%s4 + $0x8] sm:$0xf]
  %v47 = vld [vmem:[%s4 + $0xc] sm:$0xf]
  %v48 = vld [vmem:[%s5] sm:$0xf]
  %v49 = vld [vmem:[%s5 + $0x4] sm:$0xf]
  %v50 = vld [vmem:[%s5 + $0x8] sm:$0xf]
  %v51 = vld [vmem:[%s5 + $0xc] sm:$0xf]
  %v52 = vld [vmem:[%s6] sm:$0xf]
  %v53 = vld [vmem:[%s6 + $0x4] sm:$0xf]
  %v54 = vld [vmem:[%s6 + $0x8] sm:$0xf]
  %v55 = vld [vmem:[%s6 + $0xc] sm:$0xf]
  %v56 = vld [vmem:[%s7] sm:$0x1]
  %v57 = vld [vmem:[%s8] sm:$0x1]
  %v59 = vlaneseq
  %v60 = vshrl.u32 %v59, 7
  %v61 = vsub.s32 0, %v60
  %v62 = vrot.slane %v57, %v61
  %vm64 = vcmask 254976
  %65 = vst.msk [vmem:[#allocation2] sm:$0x3] %vm64, %v62
  loop: start=0, step=1, limit=8
  $region38: #{my_model_forward.4} parent=0 // loop_pre_header
    _
  $region39: #{my_model_forward.4} parent=0 // loop_header
    %s67 = sphi 0, %s71
    %p68 = scmp.ge.s32.totalorder %s67, 8
  $region40: #{my_model_forward.4} parent=0 // loop_header_branch
    %70 = sbr.rel (%p68) target = $region44
  $region41: #{my_model_forward.4} parent=0 // loop_body
    %v72 = vld [vmem:[#allocation2] sm:$0x3]
    %v73 = vpack.c.bf16 %v72, %v72
    %v76 = vunpack.c.l.s4 1966171168
    %v77 = vunpack.c.0.s8 %v76
    %v78 = vlaneseq
    %v79 = vshrl.u32 %v78, 7
    %v80 = vsub.s32 %v77, %v79
    %v81 = vrot.slane %v73, %v80
    %v83 = vunpack.c.l.s4 1966171168
    %v84 = vunpack.c.0.s8 %v83
    %v85 = vlaneseq
    %v86 = vshrl.u32 %v85, 7
    %v87 = vsub.s32 %v84, %v86
    %v88 = vrot.slane %v81, %v87
    %v89 = vunpack.i.l.s16 %v88
    %v90 = vunpack.i.h.s16 %v88
    %v91 = vpack.i.b16 %v89, %v89
    %v92 = vlaneseq
    %v93 = vshrl.u32 %v92, 7
    %v94 = vsub.s32 0, %v93
    %v95 = vrot.slane %v91, %v94
    %vm96 = vcmask 261120
    %v98 = vsel %vm96, %v95, 0
    %v101 = vsel %vm96, %v35, 0
    %103 = vmatprep.subr.bf16.mxu0 0
    %104 = vmatpush1.bf16.xpose.msra.mxu0 0
    %105 = vmatprep.subr.bf16.mxu0 0
    %106 = vmatpush1.bf16.xpose.msra.mxu0 0
    %107 = vmatprep.subr.bf16.mxu0 0
    %108 = vmatpush1.bf16.xpose.msra.mxu0 0
    %109 = vmatprep.subr.bf16.mxu0 0
    %110 = vmatpush1.bf16.xpose.msra.mxu0 0
    %111 = vmatprep.subr.bf16.mxu0 0
    %112 = vmatpush1.bf16.xpose.msra.mxu0 0
    %113 = vmatprep.subr.bf16.mxu0 0
    %114 = vmatpush1.bf16.xpose.msra.mxu0 0
    %115 = vmatprep.subr.bf16.mxu0 0
    %116 = vmatpush1.bf16.xpose.msra.mxu0 0
    %117 = vmatprep.subr.bf16.mxu0 0
    %118 = vmatpush1.bf16.xpose.msra.mxu0 %v101
    %119 = vmatprep.subr.bf16.mxu0 0
    %120 = vmatpush2.bf16.xpose.msra.mxu0 0
    %121 = vmatprep.subr.bf16.mxu0 0
    %122 = vmatpush2.bf16.xpose.msra.mxu0 0
    %123 = vmatprep.subr.bf16.mxu0 0
    %124 = vmatpush2.bf16.xpose.msra.mxu0 0
    %125 = vmatprep.subr.bf16.mxu0 0
    %126 = vmatpush2.bf16.xpose.msra.mxu0 0
    %127 = vmatprep.subr.bf16.mxu0 0
    %128 = vmatpush2.bf16.xpose.msra.mxu0 0
    %129 = vmatprep.subr.bf16.mxu0 0
    %130 = vmatpush2.bf16.xpose.msra.mxu0 0
    %131 = vmatprep.subr.bf16.mxu0 0
    %132 = vmatpush2.bf16.xpose.msra.mxu0 0
    %133 = vmatprep.subr.bf16.mxu0 0
    %134 = vmatpush2.bf16.xpose.msra.mxu0 0
    %135 = vmatprep.mubr.bf16.mxu0 0
    %136 = vmatmul.mubr.bf16.gmra.mxu0 %v98
    %v137 = vpop.f32.mrf.mxu0
    %v138 = vadd.f32 0.0, %v137
    %v139 = vpop.f32.mrf.mxu0
    %v140 = vpop.f32.mrf.mxu0
    %v141 = vpop.f32.mrf.mxu0
    %142 = vdwg.mxu0
    %v143 = vpack.i.b16 %v90, %v90
    %v144 = vlaneseq
    %v145 = vshrl.u32 %v144, 7
    %v146 = vsub.s32 0, %v145
    %v147 = vrot.slane %v143, %v146
    %v149 = vsel %vm96, %v147, 0
    %v152 = vsel %vm96, %v36, 0
    %154 = vmatprep.subr.bf16.mxu0 0
    %155 = vmatpush1.bf16.xpose.msra.mxu0 0
    %156 = vmatprep.subr.bf16.mxu0 0
    %157 = vmatpush1.bf16.xpose.msra.mxu0 0
    %158 = vmatprep.subr.bf16.mxu0 0
    %159 = vmatpush1.bf16.xpose.msra.mxu0 0
    %160 = vmatprep.subr.bf16.mxu0 0
    %161 = vmatpush1.bf16.xpose.msra.mxu0 0
    %162 = vmatprep.subr.bf16.mxu0 0
    %163 = vmatpush1.bf16.xpose.msra.mxu0 0
    %164 = vmatprep.subr.bf16.mxu0 0
    %165 = vmatpush1.bf16.xpose.msra.mxu0 0
    %166 = vmatprep.subr.bf16.mxu0 0
    %167 = vmatpush1.bf16.xpose.msra.mxu0 0
    %168 = vmatprep.subr.bf16.mxu0 0
    %169 = vmatpush1.bf16.xpose.msra.mxu0 %v152
    %170 = vmatprep.subr.bf16.mxu0 0
    %171 = vmatpush2.bf16.xpose.msra.mxu0 0
    %172 = vmatprep.subr.bf16.mxu0 0
    %173 = vmatpush2.bf16.xpose.msra.mxu0 0
    %174 = vmatprep.subr.bf16.mxu0 0
    %175 = vmatpush2.bf16.xpose.msra.mxu0 0
    %176 = vmatprep.subr.bf16.mxu0 0
    %177 = vmatpush2.bf16.xpose.msra.mxu0 0
    %178 = vmatprep.subr.bf16.mxu0 0
    %179 = vmatpush2.bf16.xpose.msra.mxu0 0
    %180 = vmatprep.subr.bf16.mxu0 0
    %181 = vmatpush2.bf16.xpose.msra.mxu0 0
    %182 = vmatprep.subr.bf16.mxu0 0
    %183 = vmatpush2.bf16.xpose.msra.mxu0 0
    %184 = vmatprep.subr.bf16.mxu0 0
    %185 = vmatpush2.bf16.xpose.msra.mxu0 0
    %186 = vmatprep.mubr.bf16.mxu0 0
    %187 = vmatmul.mubr.bf16.gmra.mxu0 %v149
    %v188 = vpop.f32.mrf.mxu0
    %v189 = vadd.f32 0.0, %v188
    %v190 = vpop.f32.mrf.mxu0
    %v191 = vpop.f32.mrf.mxu0
    %v192 = vpop.f32.mrf.mxu0
    %193 = vdwg.mxu0
    %v194 = vmul.f32 %v138, 0.17677669
    %v195 = vmul.f32 %v189, 0.17677669
    %v197 = vrot.slane %v39, 1
    %v200 = vadd.f32 %v194, %v39
    %v201 = vadd.f32 %v195, %v197
    %v204 = vrot.slane %v201, 7
    %vm205 = vcmask 1041409
    %v206 = vsel %vm205, %v204, %v200
    %vm208 = vcmask 58368
    %v209 = vsel %vm208, %v206, -inf
    %210 = vmax.xlane.f32.xlu0 %v209
    %v211 = vpop.xlane.xlu0 %210
    %v213 = vrot.slane %v211, 1
    %v216 = vsub.f32 %v200, %v211
    %v217 = vsub.f32 %v201, %v213
    %v218 = vmul.f32 %v216, 1.442695
    %v219 = vpow.pop %v218
    %v220 = vmul.f32 %v217, 1.442695
    %v221 = vpow.pop %v220
    %v224 = vrot.slane %v221, 7
    %v225 = vsel %vm205, %v224, %v219
    %v227 = vsel %vm208, %v225, 0.0
    %228 = vadd.xlane.f32.xlu0 %v227
    %v229 = vpop.xlane.xlu0 %228
    %v230 = vrcp.pop %v229
    %v232 = vrot.slane %v230, 1
    %v235 = vmul.f32 %v219, %v230
    %v236 = vmul.f32 %v221, %v232
    %v237 = vpack.c.bf16 %v235, %v235
    %v238 = vpack.c.bf16 %v236, %v236
    %vm239 = vcmask 64512
    %v241 = vsel %vm239, %v237, 0
    %vm243 = vcmask 1043456
    %v244 = vsel %vm243, %v35, 0
    %246 = vmatprep.subr.bf16.mxu0 0
    %247 = vmatpush1.bf16.msra.mxu0 0
    %248 = vmatprep.subr.bf16.mxu0 0
    %249 = vmatpush1.bf16.msra.mxu0 0
    %250 = vmatprep.subr.bf16.mxu0 0
    %251 = vmatpush1.bf16.msra.mxu0 0
    %252 = vmatprep.subr.bf16.mxu0 0
    %253 = vmatpush1.bf16.msra.mxu0 0
    %254 = vmatprep.subr.bf16.mxu0 0
    %255 = vmatpush1.bf16.msra.mxu0 0
    %256 = vmatprep.subr.bf16.mxu0 0
    %257 = vmatpush1.bf16.msra.mxu0 0
    %258 = vmatprep.subr.bf16.mxu0 0
    %259 = vmatpush1.bf16.msra.mxu0 0
    %260 = vmatprep.subr.bf16.mxu0 0
    %261 = vmatpush1.bf16.msra.mxu0 %v244
    %262 = vmatprep.subr.bf16.mxu0 0
    %263 = vmatpush2.bf16.msra.mxu0 0
    %264 = vmatprep.subr.bf16.mxu0 0
    %265 = vmatpush2.bf16.msra.mxu0 0
    %266 = vmatprep.subr.bf16.mxu0 0
    %267 = vmatpush2.bf16.msra.mxu0 0
    %268 = vmatprep.subr.bf16.mxu0 0
    %269 = vmatpush2.bf16.msra.mxu0 0
    %270 = vmatprep.subr.bf16.mxu0 0
    %271 = vmatpush2.bf16.msra.mxu0 0
    %272 = vmatprep.subr.bf16.mxu0 0
    %273 = vmatpush2.bf16.msra.mxu0 0
    %274 = vmatprep.subr.bf16.mxu0 0
    %275 = vmatpush2.bf16.msra.mxu0 0
    %276 = vmatprep.subr.bf16.mxu0 0
    %277 = vmatpush2.bf16.msra.mxu0 0
    %278 = vmatprep.mubr.bf16.mxu0 0
    %279 = vmatmul.mubr.bf16.gmra.mxu0 %v241
    %v280 = vpop.f32.mrf.mxu0
    %v281 = vadd.f32 0.0, %v280
    %v282 = vpop.f32.mrf.mxu0
    %v283 = vpop.f32.mrf.mxu0
    %v284 = vpop.f32.mrf.mxu0
    %285 = vdwg.mxu0
    %v287 = vsel %vm239, %v238, 0
    %v289 = vsel %vm243, %v36, 0
    %291 = vmatprep.subr.bf16.mxu0 0
    %292 = vmatpush1.bf16.msra.mxu0 0
    %293 = vmatprep.subr.bf16.mxu0 0
    %294 = vmatpush1.bf16.msra.mxu0 0
    %295 = vmatprep.subr.bf16.mxu0 0
    %296 = vmatpush1.bf16.msra.mxu0 0
    %297 = vmatprep.subr.bf16.mxu0 0
    %298 = vmatpush1.bf16.msra.mxu0 0
    %299 = vmatprep.subr.bf16.mxu0 0
    %300 = vmatpush1.bf16.msra.mxu0 0
    %301 = vmatprep.subr.bf16.mxu0 0
    %302 = vmatpush1.bf16.msra.mxu0 0
    %303 = vmatprep.subr.bf16.mxu0 0
    %304 = vmatpush1.bf16.msra.mxu0 0
    %305 = vmatprep.subr.bf16.mxu0 0
    %306 = vmatpush1.bf16.msra.mxu0 %v289
    %307 = vmatprep.subr.bf16.mxu0 0
    %308 = vmatpush2.bf16.msra.mxu0 0
    %309 = vmatprep.subr.bf16.mxu0 0
    %310 = vmatpush2.bf16.msra.mxu0 0
    %311 = vmatprep.subr.bf16.mxu0 0
    %312 = vmatpush2.bf16.msra.mxu0 0
    %313 = vmatprep.subr.bf16.mxu0 0
    %314 = vmatpush2.bf16.msra.mxu0 0
    %315 = vmatprep.subr.bf16.mxu0 0
    %316 = vmatpush2.bf16.msra.mxu0 0
    %317 = vmatprep.subr.bf16.mxu0 0
    %318 = vmatpush2.bf16.msra.mxu0 0
    %319 = vmatprep.subr.bf16.mxu0 0
    %320 = vmatpush2.bf16.msra.mxu0 0
    %321 = vmatprep.subr.bf16.mxu0 0
    %322 = vmatpush2.bf16.msra.mxu0 0
    %323 = vmatprep.mubr.bf16.mxu0 0
    %324 = vmatmul.mubr.bf16.gmra.mxu0 %v287
    %v325 = vpop.f32.mrf.mxu0
    %v326 = vadd.f32 0.0, %v325
    %v327 = vpop.f32.mrf.mxu0
    %v328 = vpop.f32.mrf.mxu0
    %v329 = vpop.f32.mrf.mxu0
    %330 = vdwg.mxu0
    %s331 = smul.u32 %s67, 2
    %s332 = scalar_lea.vmem %s2, %s331
    %v333 = vld [vmem:[%s332] sm:$0x3]
    %v334 = vpack.c.bf16 %v281, %v281
    %v335 = vpack.c.bf16 %v326, %v326
    %v336 = vpack.c.bf16 %v333, %v333
    %v341 = vunpack.c.l.b16 %v44
    %v342 = vunpack.c.l.b16 %v45
    %v343 = vunpack.c.l.b16 %v46
    %v344 = vunpack.c.l.b16 %v47
    %v345 = vpack.c.b16 %v342, %v341
    %v346 = vpack.c.b16 %v344, %v343
    %v350 = vsel %vm96, %v336, 0
    %352 = vmatprep.subr.bf16.mxu0 0
    %353 = vmatpush1.bf16.msra.mxu0 0
    %354 = vmatprep.subr.bf16.mxu0 0
    %355 = vmatpush1.bf16.msra.mxu0 0
    %356 = vmatprep.subr.bf16.mxu0 0
    %357 = vmatpush1.bf16.msra.mxu0 0
    %358 = vmatprep.subr.bf16.mxu0 0
    %359 = vmatpush1.bf16.msra.mxu0 0
    %360 = vmatprep.subr.bf16.mxu0 0
    %361 = vmatpush1.bf16.msra.mxu0 0
    %362 = vmatprep.subr.bf16.mxu0 0
    %363 = vmatpush1.bf16.msra.mxu0 0
    %364 = vmatprep.subr.bf16.mxu0 0
    %365 = vmatpush1.bf16.msra.mxu0 %v346
    %366 = vmatprep.subr.bf16.mxu0 0
    %367 = vmatpush1.bf16.msra.mxu0 %v345
    %368 = vmatprep.subr.bf16.mxu0 0
    %369 = vmatpush2.bf16.msra.mxu0 0
    %370 = vmatprep.subr.bf16.mxu0 0
    %371 = vmatpush2.bf16.msra.mxu0 0
    %372 = vmatprep.subr.bf16.mxu0 0
    %373 = vmatpush2.bf16.msra.mxu0 0
    %374 = vmatprep.subr.bf16.mxu0 0
    %375 = vmatpush2.bf16.msra.mxu0 0
    %376 = vmatprep.subr.bf16.mxu0 0
    %377 = vmatpush2.bf16.msra.mxu0 0
    %378 = vmatprep.subr.bf16.mxu0 0
    %379 = vmatpush2.bf16.msra.mxu0 0
    %380 = vmatprep.subr.bf16.mxu0 0
    %381 = vmatpush2.bf16.msra.mxu0 0
    %382 = vmatprep.subr.bf16.mxu0 0
    %383 = vmatpush2.bf16.msra.mxu0 0
    %384 = vmatprep.mubr.bf16.mxu0 0
    %385 = vmatmul.mubr.bf16.gmra.mxu0 %v350
    %v386 = vpop.f32.mrf.mxu0
    %v387 = vadd.f32 0.0, %v386
    %v388 = vpop.f32.mrf.mxu0
    %v389 = vpop.f32.mrf.mxu0
    %v390 = vpop.f32.mrf.mxu0
    %391 = vdwg.mxu0
    %v394 = vunpack.c.l.b16 %v334
    %v395 = vunpack.c.l.b16 %v335
    %v396 = vrot.slane %v395, 7
    %v397 = vsel %vm205, %v396, %v394
    %v398 = vpack.c.b16 %v397, %v397
    %v403 = vunpack.c.l.b16 %v40
    %v404 = vunpack.c.l.b16 %v41
    %v405 = vunpack.c.l.b16 %v42
    %v406 = vunpack.c.l.b16 %v43
    %v407 = vpack.c.b16 %v404, %v403
    %v408 = vpack.c.b16 %v406, %v405
    %v412 = vsel %vm96, %v398, 0
    %414 = vmatprep.subr.bf16.mxu0 0
    %415 = vmatpush1.bf16.msra.mxu0 0
    %416 = vmatprep.subr.bf16.mxu0 0
    %417 = vmatpush1.bf16.msra.mxu0 0
    %418 = vmatprep.subr.bf16.mxu0 0
    %419 = vmatpush1.bf16.msra.mxu0 0
    %420 = vmatprep.subr.bf16.mxu0 0
    %421 = vmatpush1.bf16.msra.mxu0 0
    %422 = vmatprep.subr.bf16.mxu0 0
    %423 = vmatpush1.bf16.msra.mxu0 0
    %424 = vmatprep.subr.bf16.mxu0 0
    %425 = vmatpush1.bf16.msra.mxu0 0
    %426 = vmatprep.subr.bf16.mxu0 0
    %427 = vmatpush1.bf16.msra.mxu0 %v408
    %428 = vmatprep.subr.bf16.mxu0 0
    %429 = vmatpush1.bf16.msra.mxu0 %v407
    %430 = vmatprep.subr.bf16.mxu0 0
    %431 = vmatpush2.bf16.msra.mxu0 0
    %432 = vmatprep.subr.bf16.mxu0 0
    %433 = vmatpush2.bf16.msra.mxu0 0
    %434 = vmatprep.subr.bf16.mxu0 0
    %435 = vmatpush2.bf16.msra.mxu0 0
    %436 = vmatprep.subr.bf16.mxu0 0
    %437 = vmatpush2.bf16.msra.mxu0 0
    %438 = vmatprep.subr.bf16.mxu0 0
    %439 = vmatpush2.bf16.msra.mxu0 0
    %440 = vmatprep.subr.bf16.mxu0 0
    %441 = vmatpush2.bf16.msra.mxu0 0
    %442 = vmatprep.subr.bf16.mxu0 0
    %443 = vmatpush2.bf16.msra.mxu0 0
    %444 = vmatprep.subr.bf16.mxu0 0
    %445 = vmatpush2.bf16.msra.mxu0 0
    %446 = vmatprep.mubr.bf16.mxu0 0
    %447 = vmatmul.mubr.bf16.gmra.mxu0 %v412
    %v448 = vpop.f32.mrf.mxu0
    %v449 = vadd.f32 %v387, %v448
    %v450 = vpop.f32.mrf.mxu0
    %v451 = vpop.f32.mrf.mxu0
    %v452 = vpop.f32.mrf.mxu0
    %453 = vdwg.mxu0
    %v455 = vlaneseq
    %v456 = vshrl.u32 %v455, 7
    %v457 = vsub.s32 0, %v456
    %v458 = vrot.slane %v56, %v457
    %v460 = vadd.f32 %v449, %v458
    %v465 = vunpack.c.l.b16 %v48
    %v466 = vunpack.c.l.b16 %v49
    %v467 = vunpack.c.l.b16 %v50
    %v468 = vunpack.c.l.b16 %v51
    %v469 = vpack.c.b16 %v466, %v465
    %v470 = vpack.c.b16 %v468, %v467
    %v474 = vsel %vm96, %v73, 0
    %476 = vmatprep.subr.bf16.mxu0 0
    %477 = vmatpush1.bf16.msra.mxu0 0
    %478 = vmatprep.subr.bf16.mxu0 0
    %479 = vmatpush1.bf16.msra.mxu0 0
    %480 = vmatprep.subr.bf16.mxu0 0
    %481 = vmatpush1.bf16.msra.mxu0 0
    %482 = vmatprep.subr.bf16.mxu0 0
    %483 = vmatpush1.bf16.msra.mxu0 0
    %484 = vmatprep.subr.bf16.mxu0 0
    %485 = vmatpush1.bf16.msra.mxu0 0
    %486 = vmatprep.subr.bf16.mxu0 0
    %487 = vmatpush1.bf16.msra.mxu0 0
    %488 = vmatprep.subr.bf16.mxu0 0
    %489 = vmatpush1.bf16.msra.mxu0 %v470
    %490 = vmatprep.subr.bf16.mxu0 0
    %491 = vmatpush1.bf16.msra.mxu0 %v469
    %492 = vmatprep.subr.bf16.mxu0 0
    %493 = vmatpush2.bf16.msra.mxu0 0
    %494 = vmatprep.subr.bf16.mxu0 0
    %495 = vmatpush2.bf16.msra.mxu0 0
    %496 = vmatprep.subr.bf16.mxu0 0
    %497 = vmatpush2.bf16.msra.mxu0 0
    %498 = vmatprep.subr.bf16.mxu0 0
    %499 = vmatpush2.bf16.msra.mxu0 0
    %500 = vmatprep.subr.bf16.mxu0 0
    %501 = vmatpush2.bf16.msra.mxu0 0
    %502 = vmatprep.subr.bf16.mxu0 0
    %503 = vmatpush2.bf16.msra.mxu0 0
    %504 = vmatprep.subr.bf16.mxu0 0
    %505 = vmatpush2.bf16.msra.mxu0 0
    %506 = vmatprep.subr.bf16.mxu0 0
    %507 = vmatpush2.bf16.msra.mxu0 0
    %508 = vmatprep.mubr.bf16.mxu0 0
    %509 = vmatmul.mubr.bf16.gmra.mxu0 %v474
    %v510 = vpop.f32.mrf.mxu0
    %v511 = vadd.f32 0.0, %v510
    %v512 = vpop.f32.mrf.mxu0
    %v513 = vpop.f32.mrf.mxu0
    %v514 = vpop.f32.mrf.mxu0
    %515 = vdwg.mxu0
    %v516 = vadd.f32 %v460, %v511
    %v517 = vxor.u32 %v516, 2147483648
    %v518 = vmul.f32 %v517, 1.442695
    %v519 = vpow.pop %v518
    %v520 = vadd.f32 %v519, 1.0
    %v521 = vrcp.pop %v520
    %v522 = vmul.f32 1.0, %v521
    %v523 = vmul.f32 %v522, %v72
    %v524 = vpack.c.bf16 %v523, %v523
    %v529 = vunpack.c.l.b16 %v52
    %v530 = vunpack.c.l.b16 %v53
    %v531 = vunpack.c.l.b16 %v54
    %v532 = vunpack.c.l.b16 %v55
    %v533 = vpack.c.b16 %v530, %v529
    %v534 = vpack.c.b16 %v532, %v531
    %v538 = vsel %vm96, %v524, 0
    %540 = vmatprep.subr.bf16.mxu0 0
    %541 = vmatpush1.bf16.msra.mxu0 0
    %542 = vmatprep.subr.bf16.mxu0 0
    %543 = vmatpush1.bf16.msra.mxu0 0
    %544 = vmatprep.subr.bf16.mxu0 0
    %545 = vmatpush1.bf16.msra.mxu0 0
    %546 = vmatprep.subr.bf16.mxu0 0
    %547 = vmatpush1.bf16.msra.mxu0 0
    %548 = vmatprep.subr.bf16.mxu0 0
    %549 = vmatpush1.bf16.msra.mxu0 0
    %550 = vmatprep.subr.bf16.mxu0 0
    %551 = vmatpush1.bf16.msra.mxu0 0
    %552 = vmatprep.subr.bf16.mxu0 0
    %553 = vmatpush1.bf16.msra.mxu0 %v534
    %554 = vmatprep.subr.bf16.mxu0 0
    %555 = vmatpush1.bf16.msra.mxu0 %v533
    %556 = vmatprep.subr.bf16.mxu0 0
    %557 = vmatpush2.bf16.msra.mxu0 0
    %558 = vmatprep.subr.bf16.mxu0 0
    %559 = vmatpush2.bf16.msra.mxu0 0
    %560 = vmatprep.subr.bf16.mxu0 0
    %561 = vmatpush2.bf16.msra.mxu0 0
    %562 = vmatprep.subr.bf16.mxu0 0
    %563 = vmatpush2.bf16.msra.mxu0 0
    %564 = vmatprep.subr.bf16.mxu0 0
    %565 = vmatpush2.bf16.msra.mxu0 0
    %566 = vmatprep.subr.bf16.mxu0 0
    %567 = vmatpush2.bf16.msra.mxu0 0
    %568 = vmatprep.subr.bf16.mxu0 0
    %569 = vmatpush2.bf16.msra.mxu0 0
    %570 = vmatprep.subr.bf16.mxu0 0
    %571 = vmatpush2.bf16.msra.mxu0 0
    %572 = vmatprep.mubr.bf16.mxu0 0
    %573 = vmatmul.mubr.bf16.gmra.mxu0 %v538
    %v574 = vpop.f32.mrf.mxu0
    %v575 = vadd.f32 0.0, %v574
    %v576 = vpop.f32.mrf.mxu0
    %v577 = vpop.f32.mrf.mxu0
    %v578 = vpop.f32.mrf.mxu0
    %579 = vdwg.mxu0
    %581 = vrot.lane.b32.xlu0 %v575, 64
    %v582 = vpop.permute.xlu0 %581
    %v584 = vadd.f32 %v460, %v582
    %v585 = vtanh.pop %v584
    %v586 = vsub.f32 1.0, %v522
    %588 = vrot.lane.b32.xlu0 %v72, 32
    %v589 = vpop.permute.xlu0 %588
    %v591 = vmul.f32 %v586, %v589
    %593 = vrot.lane.b32.xlu0 %v585, 96
    %v594 = vpop.permute.xlu0 %593
    %v596 = vmul.f32 %v522, %v594
    %v597 = vadd.f32 %v591, %v596
    %599 = vrot.lane.b32.xlu0 %v597, 96
    %v600 = vpop.permute.xlu0 %599
    %602 = vst.msk [vmem:[#allocation2] sm:$0x3] %vm64, %v600
    %s603 = scalar_lea.vmem %s9, %s331
    %604 = vst.msk [vmem:[%s603] sm:$0x3] %vm64, %v600
  $region42: #{my_model_forward.4} parent=0 // loop_footer
    %s71 = sadd.s32 1, %s67
  $region43: #{my_model_forward.4} parent=0 // loop_footer_branch
    %66 = sbr.rel target = $region39
  $region44: #{my_model_forward.4} parent=0 // loop_exit
    _
  // Predicated region
  $region45: #{my_model_forward.4} parent=0 // pred_check
    _
  $region46: #{my_model_forward.4} parent=0 // pred_check_branch
    %606 = sbr.rel (0) target = $region48
  $region47: #{my_model_forward.4} parent=0 // pred_region
    _
  $region48: #{my_model_forward.4} parent=0 // pred_fallthru
    _
  // Predicated region
  $region49: #{my_model_forward.4} parent=0 // pred_check
    _
  $region50: #{my_model_forward.4} parent=0 // pred_check_branch
    %608 = sbr.rel (0) target = $region52
  $region51: #{my_model_forward.4} parent=0 // pred_region
    _
  $region52: #{my_model_forward.4} parent=0 // pred_fallthru
    _

// kernel: my_model_forward.5
$region0: #{my_model_forward.5}
  #allocation0 [shape = 'u32[]', space=smem, size = 0x4, offset = 0x4, fixed_abs, tag = 'smem constant byte address 0x4 - core index']
  #allocation1 [shape = 'u32[144,128]{1,0:T(1,128)}', space=vmem, size = 0x12000, scoped, tag = 'internal scratch']
  #allocation2 [shape = 'f32[1,1]{1,0:T(1,128)S(1)}', space=vmem, size = 0x200, scoped, tag = 'scoped memory for my_model_forward.5']
  %s0 = inlined_call_operand.vmem [shape: f32[2,8,32], index: 0, kind: input, shape index: {}]
  %s1 = inlined_call_operand.vmem [shape: f32[2,8,32], index: 1, kind: input, shape index: {}]
  %s2 = inlined_call_operand.vmem [shape: f32[2,8], index: 2, kind: input, shape index: {}]
  %s3 = inlined_call_operand.vmem [shape: s32[2,8], index: 3, kind: input, shape index: {}]
  %s4 = inlined_call_operand.vmem [shape: s32[2,8], index: 4, kind: input, shape index: {}]
  %s5 = inlined_call_operand.vmem [shape: bf16[32,32], index: 5, kind: input, shape index: {}]
  %s6 = inlined_call_operand.vmem [shape: f32[1,32], index: 6, kind: input, shape index: {}]
  %s7 = inlined_call_operand.vmem [shape: bf16[32,32], index: 7, kind: input, shape index: {}]
  %s8 = inlined_call_operand.vmem [shape: f32[1,32], index: 8, kind: input, shape index: {}]
  %s9 = inlined_call_operand.vmem [shape: f32[1,32], index: 9, kind: input, shape index: {}]
  %s10 = inlined_call_operand.<no memory space> [shape: f32[1,1], index: 10, kind: input, shape index: {}]
  %s11 = inlined_call_operand.vmem [shape: bf16[32,64], index: 11, kind: input, shape index: {}]
  %s12 = inlined_call_operand.vmem [shape: f32[2,8,1], index: 12, kind: output, shape index: {}]
  %s13 = sld [smem:[#allocation0]]
  $region58: #{my_model_forward.5} parent=0
    _
  %s15 = ssub.s32 1, %s13
  %s16 = scalar_select 0, %s15, %s13
  %v17 = vstv %s10
  %18 = vst [vmem:[#allocation2] sm:$0x1] %v17
  // Predicated region
  $region2: #{my_model_forward.5} parent=0 // pred_check
    _
  $region3: #{my_model_forward.5} parent=0 // pred_check_branch
    %20 = sbr.rel (0) target = $region5
  $region4: #{my_model_forward.5} parent=0 // pred_region
    _
  $region5: #{my_model_forward.5} parent=0 // pred_fallthru
    _
  // Predicated region
  $region6: #{my_model_forward.5} parent=0 // pred_check
    _
  $region7: #{my_model_forward.5} parent=0 // pred_check_branch
    %22 = sbr.rel (0) target = $region9
  $region8: #{my_model_forward.5} parent=0 // pred_region
    _
  $region9: #{my_model_forward.5} parent=0 // pred_fallthru
    _
  // Predicated region
  $region10: #{my_model_forward.5} parent=0 // pred_check
    _
  $region11: #{my_model_forward.5} parent=0 // pred_check_branch
    %24 = sbr.rel (0) target = $region13
  $region12: #{my_model_forward.5} parent=0 // pred_region
    _
  $region13: #{my_model_forward.5} parent=0 // pred_fallthru
    _
  // Predicated region
  $region14: #{my_model_forward.5} parent=0 // pred_check
    _
  $region15: #{my_model_forward.5} parent=0 // pred_check_branch
    %26 = sbr.rel (0) target = $region17
  $region16: #{my_model_forward.5} parent=0 // pred_region
    _
  $region17: #{my_model_forward.5} parent=0 // pred_fallthru
    _
  // Predicated region
  $region18: #{my_model_forward.5} parent=0 // pred_check
    _
  $region19: #{my_model_forward.5} parent=0 // pred_check_branch
    %28 = sbr.rel (0) target = $region21
  $region20: #{my_model_forward.5} parent=0 // pred_region
    _
  $region21: #{my_model_forward.5} parent=0 // pred_fallthru
    _
  // Predicated region
  $region22: #{my_model_forward.5} parent=0 // pred_check
    _
  $region23: #{my_model_forward.5} parent=0 // pred_check_branch
    %30 = sbr.rel (0) target = $region25
  $region24: #{my_model_forward.5} parent=0 // pred_region
    _
  $region25: #{my_model_forward.5} parent=0 // pred_fallthru
    _
  // Predicated region
  $region26: #{my_model_forward.5} parent=0 // pred_check
    _
  $region27: #{my_model_forward.5} parent=0 // pred_check_branch
    %32 = sbr.rel (0) target = $region29
  $region28: #{my_model_forward.5} parent=0 // pred_region
    _
  $region29: #{my_model_forward.5} parent=0 // pred_fallthru
    _
  // Predicated region
  $region30: #{my_model_forward.5} parent=0 // pred_check
    _
  $region31: #{my_model_forward.5} parent=0 // pred_check_branch
    %34 = sbr.rel (0) target = $region33
  $region32: #{my_model_forward.5} parent=0 // pred_region
    _
  $region33: #{my_model_forward.5} parent=0 // pred_fallthru
    _
  // Predicated region
  $region34: #{my_model_forward.5} parent=0 // pred_check
    _
  $region35: #{my_model_forward.5} parent=0 // pred_check_branch
    %36 = sbr.rel (0) target = $region37
  $region36: #{my_model_forward.5} parent=0 // pred_region
    _
  $region37: #{my_model_forward.5} parent=0 // pred_fallthru
    _
  // Predicated region
  $region38: #{my_model_forward.5} parent=0 // pred_check
    _
  $region39: #{my_model_forward.5} parent=0 // pred_check_branch
    %38 = sbr.rel (0) target = $region41
  $region40: #{my_model_forward.5} parent=0 // pred_region
    _
  $region41: #{my_model_forward.5} parent=0 // pred_fallthru
    _
  // Predicated region
  $region42: #{my_model_forward.5} parent=0 // pred_check
    _
  $region43: #{my_model_forward.5} parent=0 // pred_check_branch
    %40 = sbr.rel (0) target = $region45
  $region44: #{my_model_forward.5} parent=0 // pred_region
    _
  $region45: #{my_model_forward.5} parent=0 // pred_fallthru
    _
  // Predicated region
  $region46: #{my_model_forward.5} parent=0 // pred_check
    _
  $region47: #{my_model_forward.5} parent=0 // pred_check_branch
    %42 = sbr.rel (0) target = $region49
  $region48: #{my_model_forward.5} parent=0 // pred_region
    _
  $region49: #{my_model_forward.5} parent=0 // pred_fallthru
    _
  %v44 = vld [vmem:[%s0] sm:$0xff]
  %v45 = vld [vmem:[%s0 + $0x8] sm:$0xff]
  %v46 = vld [vmem:[%s1] sm:$0xff]
  %v47 = vld [vmem:[%s1 + $0x8] sm:$0xff]
  %v48 = vld [vmem:[%s2] sm:$0x3]
  %v49 = vsub.f32 1.0, %v48
  %v50 = vmul.f32 %v49, -1e+30
  %v51 = vld [vmem:[%s4] sm:$0x3]
  %v52 = vpack.c.bf16 %v45, %v44
  %v53 = vld [vmem:[%s5] sm:$0xf]
  %v54 = vld [vmem:[%s5 + $0x4] sm:$0xf]
  %v55 = vld [vmem:[%s5 + $0x8] sm:$0xf]
  %v56 = vld [vmem:[%s5 + $0xc] sm:$0xf]
  %v57 = vld [vmem:[%s6] sm:$0x1]
  %v59 = vlaneseq
  %v60 = vshrl.u32 %v59, 7
  %v61 = vsub.s32 0, %v60
  %v62 = vrot.slane %v57, %v61
  %v68 = vunpack.c.l.b16 %v53
  %v69 = vunpack.c.l.b16 %v54
  %v70 = vunpack.c.l.b16 %v55
  %v71 = vunpack.c.l.b16 %v56
  %v72 = vpack.c.b16 %v69, %v68
  %v73 = vpack.c.b16 %v71, %v70
  %vm76 = vcmask 261120
  %v78 = vsel %vm76, %v52, 0
  %80 = vmatprep.subr.bf16.mxu0 0
  %81 = vmatpush1.bf16.msra.mxu0 0
  %82 = vmatprep.subr.bf16.mxu0 0
  %83 = vmatpush1.bf16.msra.mxu0 0
  %84 = vmatprep.subr.bf16.mxu0 0
  %85 = vmatpush1.bf16.msra.mxu0 0
  %86 = vmatprep.subr.bf16.mxu0 0
  %87 = vmatpush1.bf16.msra.mxu0 0
  %88 = vmatprep.subr.bf16.mxu0 0
  %89 = vmatpush1.bf16.msra.mxu0 0
  %90 = vmatprep.subr.bf16.mxu0 0
  %91 = vmatpush1.bf16.msra.mxu0 0
  %92 = vmatprep.subr.bf16.mxu0 0
  %93 = vmatpush1.bf16.msra.mxu0 %v73
  %94 = vmatprep.subr.bf16.mxu0 0
  %95 = vmatpush1.bf16.msra.mxu0 %v72
  %96 = vmatprep.subr.bf16.mxu0 0
  %97 = vmatpush2.bf16.msra.mxu0 0
  %98 = vmatprep.subr.bf16.mxu0 0
  %99 = vmatpush2.bf16.msra.mxu0 0
  %100 = vmatprep.subr.bf16.mxu0 0
  %101 = vmatpush2.bf16.msra.mxu0 0
  %102 = vmatprep.subr.bf16.mxu0 0
  %103 = vmatpush2.bf16.msra.mxu0 0
  %104 = vmatprep.subr.bf16.mxu0 0
  %105 = vmatpush2.bf16.msra.mxu0 0
  %106 = vmatprep.subr.bf16.mxu0 0
  %107 = vmatpush2.bf16.msra.mxu0 0
  %108 = vmatprep.subr.bf16.mxu0 0
  %109 = vmatpush2.bf16.msra.mxu0 0
  %110 = vmatprep.subr.bf16.mxu0 0
  %111 = vmatpush2.bf16.msra.mxu0 0
  %112 = vmatprep.mubr.bf16.mxu0 0
  %113 = vmatmul.mubr.bf16.gmra.mxu0 %v78
  %v114 = vpop.f32.mrf.mxu0
  %v115 = vadd.f32 %v62, %v114
  %v116 = vpop.f32.mrf.mxu0
  %v117 = vpop.f32.mrf.mxu0
  %v118 = vadd.f32 %v62, %v117
  %v119 = vpop.f32.mrf.mxu0
  %120 = vdwg.mxu0
  %v121 = vpack.c.bf16 %v118, %v115
  %v122 = vld [vmem:[%s11] sm:$0xf]
  %v123 = vld [vmem:[%s11 + $0x4] sm:$0xf]
  %v124 = vld [vmem:[%s11 + $0x8] sm:$0xf]
  %v125 = vld [vmem:[%s11 + $0xc] sm:$0xf]
  %v130 = vunpack.c.l.b16 %v122
  %v131 = vunpack.c.l.b16 %v123
  %v132 = vunpack.c.l.b16 %v124
  %v133 = vunpack.c.l.b16 %v125
  %v134 = vpack.c.b16 %v131, %v130
  %v135 = vpack.c.b16 %v133, %v132
  %v139 = vsel %vm76, %v121, 0
  %141 = vmatprep.subr.bf16.mxu0 0
  %142 = vmatpush1.bf16.msra.mxu0 0
  %143 = vmatprep.subr.bf16.mxu0 0
  %144 = vmatpush1.bf16.msra.mxu0 0
  %145 = vmatprep.subr.bf16.mxu0 0
  %146 = vmatpush1.bf16.msra.mxu0 0
  %147 = vmatprep.subr.bf16.mxu0 0
  %148 = vmatpush1.bf16.msra.mxu0 0
  %149 = vmatprep.subr.bf16.mxu0 0
  %150 = vmatpush1.bf16.msra.mxu0 0
  %151 = vmatprep.subr.bf16.mxu0 0
  %152 = vmatpush1.bf16.msra.mxu0 0
  %153 = vmatprep.subr.bf16.mxu0 0
  %154 = vmatpush1.bf16.msra.mxu0 %v135
  %155 = vmatprep.subr.bf16.mxu0 0
  %156 = vmatpush1.bf16.msra.mxu0 %v134
  %157 = vmatprep.subr.bf16.mxu0 0
  %158 = vmatpush2.bf16.msra.mxu0 0
  %159 = vmatprep.subr.bf16.mxu0 0
  %160 = vmatpush2.bf16.msra.mxu0 0
  %161 = vmatprep.subr.bf16.mxu0 0
  %162 = vmatpush2.bf16.msra.mxu0 0
  %163 = vmatprep.subr.bf16.mxu0 0
  %164 = vmatpush2.bf16.msra.mxu0 0
  %165 = vmatprep.subr.bf16.mxu0 0
  %166 = vmatpush2.bf16.msra.mxu0 0
  %167 = vmatprep.subr.bf16.mxu0 0
  %168 = vmatpush2.bf16.msra.mxu0 0
  %169 = vmatprep.subr.bf16.mxu0 0
  %170 = vmatpush2.bf16.msra.mxu0 0
  %171 = vmatprep.subr.bf16.mxu0 0
  %172 = vmatpush2.bf16.msra.mxu0 0
  %173 = vmatprep.mubr.bf16.mxu0 0
  %174 = vmatmul.mubr.bf16.gmra.mxu0 %v139
  %v175 = vpop.f32.mrf.mxu0
  %v176 = vadd.f32 0.0, %v175
  %v177 = vpop.f32.mrf.mxu0
  %v178 = vpop.f32.mrf.mxu0
  %v179 = vadd.f32 0.0, %v178
  %v180 = vpop.f32.mrf.mxu0
  %181 = vdwg.mxu0
  %vm182 = vcmask 523264
  %v183 = vsel %vm182, %v176, -inf
  %184 = vmax.xlane.f32.xlu0 %v183
  %v185 = vpop.xlane.xlu0 %184
  %v186 = vsel %vm182, %v179, -inf
  %187 = vmax.xlane.f32.xlu0 %v186
  %v188 = vpop.xlane.xlu0 %187
  %v189 = vsub.f32 %v176, %v185
  %v190 = vsub.f32 %v179, %v188
  %v191 = vmul.f32 %v189, 1.442695
  %v192 = vpow.pop %v191
  %v193 = vmul.f32 %v190, 1.442695
  %v194 = vpow.pop %v193
  %v195 = vsel %vm182, %v192, 0.0
  %196 = vadd.xlane.f32.xlu0 %v195
  %v197 = vpop.xlane.xlu0 %196
  %v198 = vsel %vm182, %v194, 0.0
  %199 = vadd.xlane.f32.xlu0 %v198
  %v200 = vpop.xlane.xlu0 %199
  %v201 = vlaneseq
  %v202 = vand.u32 %v201, 127
  %v203 = vlaneseq
  %v204 = vshrl.u32 %v203, 7
  %v205 = vsub.s32 0, %v204
  %v206 = vrot.slane %v51, %v205
  %208 = vbcast.lane.b32.xlu0 %v206, 256
  %v209 = vpop.permute.xlu0 %208
  %v210 = vlaneseq
  %v211 = vshrl.u32 %v210, 7
  %v212 = vsub.s32 1, %v211
  %v213 = vrot.slane %v51, %v212
  %215 = vbcast.lane.b32.xlu0 %v213, 256
  %v216 = vpop.permute.xlu0 %215
  %vm217 = vcmp.eq.s32.totalorder %v202, %v209
  %vm218 = vcmp.eq.s32.totalorder %v202, %v216
  %v219 = vsel %vm217, %v176, 0.0
  %v220 = vsel %vm218, %v179, 0.0
  %v221 = vsel %vm182, %v219, 0.0
  %222 = vadd.xlane.f32.xlu0 %v221
  %v223 = vpop.xlane.xlu0 %222
  %v224 = vsel %vm182, %v220, 0.0
  %225 = vadd.xlane.f32.xlu0 %v224
  %v226 = vpop.xlane.xlu0 %225
  %v227 = vsub.f32 %v223, %v185
  %v228 = vsub.f32 %v226, %v188
  %v229 = vmul.f32 %v227, 1.442695
  %v230 = vpow.pop %v229
  %v231 = vmul.f32 %v228, 1.442695
  %v232 = vpow.pop %v231
  %v233 = vrcp.pop %v197
  %v234 = vrcp.pop %v200
  %v235 = vmul.f32 %v230, %v233
  %v236 = vmul.f32 %v232, %v234
  %v237 = vld [vmem:[%s7] sm:$0xf]
  %v238 = vld [vmem:[%s7 + $0x4] sm:$0xf]
  %v239 = vld [vmem:[%s7 + $0x8] sm:$0xf]
  %v240 = vld [vmem:[%s7 + $0xc] sm:$0xf]
  %v241 = vld [vmem:[%s8] sm:$0x1]
  %v243 = vlaneseq
  %v244 = vshrl.u32 %v243, 7
  %v245 = vsub.s32 0, %v244
  %v246 = vrot.slane %v241, %v245
  %v252 = vunpack.c.l.b16 %v237
  %v253 = vunpack.c.l.b16 %v238
  %v254 = vunpack.c.l.b16 %v239
  %v255 = vunpack.c.l.b16 %v240
  %v256 = vpack.c.b16 %v253, %v252
  %v257 = vpack.c.b16 %v255, %v254
  %260 = vmatprep.subr.bf16.mxu0 0
  %261 = vmatpush1.bf16.msra.mxu0 0
  %262 = vmatprep.subr.bf16.mxu0 0
  %263 = vmatpush1.bf16.msra.mxu0 0
  %264 = vmatprep.subr.bf16.mxu0 0
  %265 = vmatpush1.bf16.msra.mxu0 0
  %266 = vmatprep.subr.bf16.mxu0 0
  %267 = vmatpush1.bf16.msra.mxu0 0
  %268 = vmatprep.subr.bf16.mxu0 0
  %269 = vmatpush1.bf16.msra.mxu0 0
  %270 = vmatprep.subr.bf16.mxu0 0
  %271 = vmatpush1.bf16.msra.mxu0 0
  %272 = vmatprep.subr.bf16.mxu0 0
  %273 = vmatpush1.bf16.msra.mxu0 %v257
  %274 = vmatprep.subr.bf16.mxu0 0
  %275 = vmatpush1.bf16.msra.mxu0 %v256
  %276 = vmatprep.subr.bf16.mxu0 0
  %277 = vmatpush2.bf16.msra.mxu0 0
  %278 = vmatprep.subr.bf16.mxu0 0
  %279 = vmatpush2.bf16.msra.mxu0 0
  %280 = vmatprep.subr.bf16.mxu0 0
  %281 = vmatpush2.bf16.msra.mxu0 0
  %282 = vmatprep.subr.bf16.mxu0 0
  %283 = vmatpush2.bf16.msra.mxu0 0
  %284 = vmatprep.subr.bf16.mxu0 0
  %285 = vmatpush2.bf16.msra.mxu0 0
  %286 = vmatprep.subr.bf16.mxu0 0
  %287 = vmatpush2.bf16.msra.mxu0 0
  %288 = vmatprep.subr.bf16.mxu0 0
  %289 = vmatpush2.bf16.msra.mxu0 0
  %290 = vmatprep.subr.bf16.mxu0 0
  %291 = vmatpush2.bf16.msra.mxu0 0
  %292 = vmatprep.mubr.bf16.mxu0 0
  %293 = vmatmul.mubr.bf16.gmra.mxu0 %v78
  %v294 = vpop.f32.mrf.mxu0
  %v295 = vadd.f32 %v246, %v294
  %v296 = vpop.f32.mrf.mxu0
  %v297 = vpop.f32.mrf.mxu0
  %v298 = vadd.f32 %v246, %v297
  %v299 = vpop.f32.mrf.mxu0
  %300 = vdwg.mxu0
  %v301 = vpack.c.bf16 %v295, %v295
  %v302 = vpack.c.bf16 %v298, %v298
  %v303 = vpack.c.bf16 %v46, %v46
  %v304 = vpack.c.bf16 %v47, %v47
  %v307 = vunpack.c.l.s4 1966171168
  %v308 = vunpack.c.0.s8 %v307
  %v309 = vlaneseq
  %v310 = vshrl.u32 %v309, 7
  %v311 = vsub.s32 %v308, %v310
  %v312 = vrot.slane %v50, %v311
  %v313 = vcombine.high %v312, %v312
  %v315 = vunpack.c.l.s4 1966171168
  %v316 = vunpack.c.0.s8 %v315
  %v317 = vlaneseq
  %v318 = vshrl.u32 %v317, 7
  %v319 = vsub.s32 %v316, %v318
  %v320 = vrot.slane %v312, %v319
  %v322 = vunpack.c.l.s4 1966171168
  %v323 = vunpack.c.0.s8 %v322
  %v324 = vlaneseq
  %v325 = vshrl.u32 %v324, 7
  %v326 = vsub.s32 %v323, %v325
  %v327 = vrot.slane %v313, %v326
  %v328 = vlaneseq
  %v329 = vshrl.u32 %v328, 7
  %v330 = vsub.s32 0, %v329
  %v331 = vrot.slane %v320, %v330
  %v332 = vlaneseq
  %v333 = vshrl.u32 %v332, 7
  %v334 = vsub.s32 0, %v333
  %v335 = vrot.slane %v327, %v334
  %v339 = vsel %vm76, %v301, 0
  %v342 = vsel %vm76, %v303, 0
  %344 = vmatprep.subr.bf16.mxu0 0
  %345 = vmatpush1.bf16.xpose.msra.mxu0 0
  %346 = vmatprep.subr.bf16.mxu0 0
  %347 = vmatpush1.bf16.xpose.msra.mxu0 0
  %348 = vmatprep.subr.bf16.mxu0 0
  %349 = vmatpush1.bf16.xpose.msra.mxu0 0
  %350 = vmatprep.subr.bf16.mxu0 0
  %351 = vmatpush1.bf16.xpose.msra.mxu0 0
  %352 = vmatprep.subr.bf16.mxu0 0
  %353 = vmatpush1.bf16.xpose.msra.mxu0 0
  %354 = vmatprep.subr.bf16.mxu0 0
  %355 = vmatpush1.bf16.xpose.msra.mxu0 0
  %356 = vmatprep.subr.bf16.mxu0 0
  %357 = vmatpush1.bf16.xpose.msra.mxu0 0
  %358 = vmatprep.subr.bf16.mxu0 0
  %359 = vmatpush1.bf16.xpose.msra.mxu0 %v342
  %360 = vmatprep.subr.bf16.mxu0 0
  %361 = vmatpush2.bf16.xpose.msra.mxu0 0
  %362 = vmatprep.subr.bf16.mxu0 0
  %363 = vmatpush2.bf16.xpose.msra.mxu0 0
  %364 = vmatprep.subr.bf16.mxu0 0
  %365 = vmatpush2.bf16.xpose.msra.mxu0 0
  %366 = vmatprep.subr.bf16.mxu0 0
  %367 = vmatpush2.bf16.xpose.msra.mxu0 0
  %368 = vmatprep.subr.bf16.mxu0 0
  %369 = vmatpush2.bf16.xpose.msra.mxu0 0
  %370 = vmatprep.subr.bf16.mxu0 0
  %371 = vmatpush2.bf16.xpose.msra.mxu0 0
  %372 = vmatprep.subr.bf16.mxu0 0
  %373 = vmatpush2.bf16.xpose.msra.mxu0 0
  %374 = vmatprep.subr.bf16.mxu0 0
  %375 = vmatpush2.bf16.xpose.msra.mxu0 0
  %376 = vmatprep.mubr.bf16.mxu0 0
  %377 = vmatmul.mubr.bf16.gmra.mxu0 %v339
  %v378 = vpop.f32.mrf.mxu0
  %v379 = vadd.f32 %v331, %v378
  %v380 = vpop.f32.mrf.mxu0
  %v381 = vpop.f32.mrf.mxu0
  %v382 = vpop.f32.mrf.mxu0
  %383 = vdwg.mxu0
  %v385 = vsel %vm76, %v302, 0
  %v388 = vsel %vm76, %v304, 0
  %390 = vmatprep.subr.bf16.mxu0 0
  %391 = vmatpush1.bf16.xpose.msra.mxu0 0
  %392 = vmatprep.subr.bf16.mxu0 0
  %393 = vmatpush1.bf16.xpose.msra.mxu0 0
  %394 = vmatprep.subr.bf16.mxu0 0
  %395 = vmatpush1.bf16.xpose.msra.mxu0 0
  %396 = vmatprep.subr.bf16.mxu0 0
  %397 = vmatpush1.bf16.xpose.msra.mxu0 0
  %398 = vmatprep.subr.bf16.mxu0 0
  %399 = vmatpush1.bf16.xpose.msra.mxu0 0
  %400 = vmatprep.subr.bf16.mxu0 0
  %401 = vmatpush1.bf16.xpose.msra.mxu0 0
  %402 = vmatprep.subr.bf16.mxu0 0
  %403 = vmatpush1.bf16.xpose.msra.mxu0 0
  %404 = vmatprep.subr.bf16.mxu0 0
  %405 = vmatpush1.bf16.xpose.msra.mxu0 %v388
  %406 = vmatprep.subr.bf16.mxu0 0
  %407 = vmatpush2.bf16.xpose.msra.mxu0 0
  %408 = vmatprep.subr.bf16.mxu0 0
  %409 = vmatpush2.bf16.xpose.msra.mxu0 0
  %410 = vmatprep.subr.bf16.mxu0 0
  %411 = vmatpush2.bf16.xpose.msra.mxu0 0
  %412 = vmatprep.subr.bf16.mxu0 0
  %413 = vmatpush2.bf16.xpose.msra.mxu0 0
  %414 = vmatprep.subr.bf16.mxu0 0
  %415 = vmatpush2.bf16.xpose.msra.mxu0 0
  %416 = vmatprep.subr.bf16.mxu0 0
  %417 = vmatpush2.bf16.xpose.msra.mxu0 0
  %418 = vmatprep.subr.bf16.mxu0 0
  %419 = vmatpush2.bf16.xpose.msra.mxu0 0
  %420 = vmatprep.subr.bf16.mxu0 0
  %421 = vmatpush2.bf16.xpose.msra.mxu0 0
  %422 = vmatprep.mubr.bf16.mxu0 0
  %423 = vmatmul.mubr.bf16.gmra.mxu0 %v385
  %v424 = vpop.f32.mrf.mxu0
  %v425 = vadd.f32 %v335, %v424
  %v426 = vpop.f32.mrf.mxu0
  %v427 = vpop.f32.mrf.mxu0
  %v428 = vpop.f32.mrf.mxu0
  %429 = vdwg.mxu0
  %vm430 = vcmask 64512
  %v431 = vsel %vm430, %v379, -inf
  %432 = vmax.xlane.f32.xlu0 %v431
  %v433 = vpop.xlane.xlu0 %432
  %v434 = vsel %vm430, %v425, -inf
  %435 = vmax.xlane.f32.xlu0 %v434
  %v436 = vpop.xlane.xlu0 %435
  %v437 = vsub.f32 %v379, %v433
  %v438 = vsub.f32 %v425, %v436
  %v439 = vmul.f32 %v437, 1.442695
  %v440 = vpow.pop %v439
  %v441 = vmul.f32 %v438, 1.442695
  %v442 = vpow.pop %v441
  %v443 = vsel %vm430, %v440, 0.0
  %444 = vadd.xlane.f32.xlu0 %v443
  %v445 = vpop.xlane.xlu0 %444
  %v446 = vsel %vm430, %v442, 0.0
  %447 = vadd.xlane.f32.xlu0 %v446
  %v448 = vpop.xlane.xlu0 %447
  %v449 = vrcp.pop %v445
  %v450 = vrcp.pop %v448
  %v451 = vmul.f32 %v440, %v449
  %v452 = vmul.f32 %v442, %v450
  %v453 = vld [vmem:[%s3] sm:$0x3]
  %v455 = vunpack.c.l.s4 1966171168
  %v456 = vunpack.c.0.s8 %v455
  %v457 = vlaneseq
  %v458 = vshrl.u32 %v457, 7
  %v459 = vsub.s32 %v456, %v458
  %v460 = vrot.slane %v453, %v459
  %v461 = vcombine.high %v460, %v460
  %v463 = vunpack.c.l.s4 1966171168
  %v464 = vunpack.c.0.s8 %v463
  %v465 = vlaneseq
  %v466 = vshrl.u32 %v465, 7
  %v467 = vsub.s32 %v464, %v466
  %v468 = vrot.slane %v460, %v467
  %v470 = vunpack.c.l.s4 1966171168
  %v471 = vunpack.c.0.s8 %v470
  %v472 = vlaneseq
  %v473 = vshrl.u32 %v472, 7
  %v474 = vsub.s32 %v471, %v473
  %v475 = vrot.slane %v461, %v474
  %v476 = vlaneseq
  %v477 = vshrl.u32 %v476, 7
  %v478 = vsub.s32 0, %v477
  %v479 = vrot.slane %v468, %v478
  %v480 = vlaneseq
  %v481 = vshrl.u32 %v480, 7
  %v482 = vsub.s32 0, %v481
  %v483 = vrot.slane %v475, %v482
  %vm484 = vcmp.eq.s32.totalorder %v479, %v209
  %vm485 = vcmp.eq.s32.totalorder %v483, %v216
  %v486 = vsel %vm484, 1, 0
  %v487 = vsel %vm485, 1, 0
  %v488 = vcvt.s32.f32 %v486
  %v489 = vcvt.s32.f32 %v487
  %v490 = vmul.f32 %v451, %v488
  %v491 = vmul.f32 %v452, %v489
  %v492 = vsel %vm430, %v490, 0.0
  %493 = vadd.xlane.f32.xlu0 %v492
  %v494 = vpop.xlane.xlu0 %493
  %v495 = vsel %vm430, %v491, 0.0
  %496 = vadd.xlane.f32.xlu0 %v495
  %v497 = vpop.xlane.xlu0 %496
  %v498 = vld [vmem:[%s9] sm:$0x1]
  %v500 = vlaneseq
  %v501 = vshrl.u32 %v500, 7
  %v502 = vsub.s32 0, %v501
  %v503 = vrot.slane %v498, %v502
  %v505 = vmul.f32 %v44, %v503
  %v506 = vmul.f32 %v45, %v503
  %v507 = vsel %vm76, %v505, 0.0
  %508 = vadd.xlane.f32.xlu0 %v507
  %v509 = vpop.xlane.xlu0 %508
  %v510 = vsel %vm76, %v506, 0.0
  %511 = vadd.xlane.f32.xlu0 %v510
  %v512 = vpop.xlane.xlu0 %511
  %v513 = vld [vmem:[#allocation2] sm:$0x1]
  %v515 = vlaneseq
  %v516 = vshrl.u32 %v515, 7
  %v517 = vsub.s32 0, %v516
  %v518 = vrot.slane %v513, %v517
  %v520 = vadd.f32 %v509, %v518
  %v521 = vadd.f32 %v512, %v518
  %v522 = vxor.u32 %v520, 2147483648
  %v523 = vxor.u32 %v521, 2147483648
  %v524 = vmul.f32 %v522, 1.442695
  %v525 = vpow.pop %v524
  %v526 = vmul.f32 %v523, 1.442695
  %v527 = vpow.pop %v526
  %v528 = vadd.f32 %v525, 1.0
  %v529 = vadd.f32 %v527, 1.0
  %v530 = vrcp.pop %v528
  %v531 = vmul.f32 1.0, %v530
  %v532 = vrcp.pop %v529
  %v533 = vmul.f32 1.0, %v532
  %v534 = vmul.f32 %v235, %v531
  %v535 = vmul.f32 %v236, %v533
  %v536 = vsub.f32 1.0, %v531
  %v537 = vsub.f32 1.0, %v533
  %v538 = vmul.f32 %v494, %v536
  %v539 = vmul.f32 %v497, %v537
  %v540 = vadd.f32 %v534, %v538
  %v541 = vadd.f32 %v535, %v539
  %vm542 = vcmp.ne.s32.totalorder %v209, 0
  %vm543 = vcmp.ne.s32.totalorder %v216, 0
  %v544 = vsel %vm542, 1, 0
  %v545 = vsel %vm543, 1, 0
  %v546 = vcvt.s32.f32 %v544
  %v547 = vcvt.s32.f32 %v545
  %v548 = vadd.f32 %v540, 1e-06
  %v549 = vadd.f32 %v541, 1e-06
  %v550 = vlog2.pop %v548
  %v551 = vmul.f32 %v550, 0.6931472
  %v552 = vlog2.pop %v549
  %v553 = vmul.f32 %v552, 0.6931472
  %v554 = vsub.f32 0.0, %v551
  %v555 = vsub.f32 0.0, %v553
  %v556 = vmul.f32 %v554, %v546
  %v557 = vmul.f32 %v555, %v547
  %vm558 = vcmask 7168
  %559 = vst.msk [vmem:[%s12] sm:$0xff] %vm558, %v556
  %560 = vst.msk [vmem:[%s12 + $0x8] sm:$0xff] %vm558, %v557
  // Predicated region
  $region50: #{my_model_forward.5} parent=0 // pred_check
    _
  $region51: #{my_model_forward.5} parent=0 // pred_check_branch
    %562 = sbr.rel (0) target = $region53
  $region52: #{my_model_forward.5} parent=0 // pred_region
    _
  $region53: #{my_model_forward.5} parent=0 // pred_fallthru
    _
  // Predicated region
  $region54: #{my_model_forward.5} parent=0 // pred_check
    _
  $region55: #{my_model_forward.5} parent=0 // pred_check_branch
    %564 = sbr.rel (0) target = $region57
  $region56: #{my_model_forward.5} parent=0 // pred_region
    _
  $region57: #{my_model_forward.5} parent=0 // pred_fallthru
    _

</llo_original>
